<compile_context>
chip_gen: v6e
topology: v6e:2x2x1
jax: 0.10.0
libtpu: 0.0.40
codegen_flags: <defaults>
</compile_context>

<pallas_src>
import math

import jax
import jax.numpy as jnp
from jax import lax
from jax.experimental import pallas as pl
from jax.experimental.pallas import tpu as pltpu

# ---- small, module-consistent hyperparameters ----
B = 2            # batch
T = 8            # sequence length
I = 6            # input_size
H = 32           # hidden_size
NH = 8           # attention heads (as in the module)
DH = H // NH     # head dim
NF = 4           # additional features (use_rating_curve=True)
L = T + 1        # combined sequence length (lstm_out ++ additional_projected)
TB = T * B
LB = L * B
SCALE = 1.0 / math.sqrt(DH)

assert B == 2 and H == NH * DH  # parity trick in the selection matrix assumes B == 2

# ---- weight-slab row layout (lane width = 4H = 128, rows 8-aligned per section) ----
R_WIH = 0          # rows [0, 6)   : W_ih^T                  (I, 4H)
R_WHH = 8          # rows [8, 40)  : W_hh^T                  (H, 4H)
R_BL = 40          # row 40        : b_ih + b_hh             (1, 4H)
R_BPROJ = 41       # row 41        : b_proj                  (1, H)   lanes [0,32)
R_BQKV = 42        # row 42        : [b_q | b_k | b_v]       (1, 3H)  lanes [0,96)
R_BOFC = 43        # row 43        : b_o @ w_fc^T + b_fc     (1, 1)   lane 0
R_WPROJ = 48       # rows [48, 52) : W_proj^T                (NF, H)  lanes [0,32)
R_WQKV = 56        # rows [56, 88) : [Wq^T|Wk^T|Wv^T | Wo^T @ w_fc^T]  lanes [0,97)
SLAB_ROWS = 88
SLAB_LANES = 4 * H


def t3_lstm_kernel(x_ref, feats_ref, w_ref, out_ref):
    """x_ref: (T*B, I) time-major rows; feats_ref: (B, NF); w_ref: packed slab."""
    f32 = jnp.float32

    # ---- unpack the weight slab (static slices of one VMEM ref) ----
    wih = w_ref[R_WIH:R_WIH + I, :]                       # (I, 4H)
    whh = w_ref[R_WHH:R_WHH + H, :]                       # (H, 4H)
    bl = w_ref[R_BL:R_BL + 1, :]                          # (1, 4H)
    bproj = w_ref[R_BPROJ:R_BPROJ + 1, 0:H]               # (1, H)
    bqkv = w_ref[R_BQKV:R_BQKV + 1, 0:3 * H]              # (1, 3H)
    b_ofc = w_ref[R_BOFC:R_BOFC + 1, 0:1]                 # (1, 1)
    wproj = w_ref[R_WPROJ:R_WPROJ + NF, 0:H]              # (NF, H)
    wqkv = w_ref[R_WQKV:R_WQKV + H, 0:3 * H]              # (H, 3H)
    w_ofc = w_ref[R_WQKV:R_WQKV + H, 3 * H:3 * H + 1]     # (H, 1)  = Wo^T @ w_fc^T

    # ---------------- LSTM (PyTorch gate order i, f, g, o) ----------------
    # x-side matmul + biases hoisted out of the recurrent loop: one (T*B, I) matmul.
    xg = jnp.dot(x_ref[...], wih, preferred_element_type=f32) + bl      # (TB, 4H)

    h = jnp.zeros((B, H), f32)
    c = jnp.zeros((B, H), f32)
    hs = []
    for t in range(T):                      # fully unrolled; only h @ W_hh is serial
        gates = xg[t * B:(t + 1) * B, :] + jnp.dot(h, whh, preferred_element_type=f32)
        sg = jax.nn.sigmoid(gates)          # full-vreg EUP pass
        tg = jnp.tanh(gates)                # full-vreg EUP pass
        c = sg[:, H:2 * H] * c + sg[:, 0:H] * tg[:, 2 * H:3 * H]
        h = sg[:, 3 * H:4 * H] * jnp.tanh(c)
        hs.append(h)

    # ------------- additional feature projection (attention query src) -----
    addl = jnp.dot(feats_ref[...], wproj, preferred_element_type=f32) + bproj   # (B, H)
    comb = jnp.concatenate(hs + [addl], axis=0)          # (LB, H): rows l*B + b

    # ---------------------- fused Q/K/V projection -------------------------
    qkv = jnp.dot(comb, wqkv, preferred_element_type=f32) + bqkv                # (LB, 3H)
    q = qkv[TB:TB + B, 0:H]                              # (B, H)  query = proj of addl
    k = qkv[:, H:2 * H]                                  # (LB, H)
    v = qkv[:, 2 * H:3 * H]                              # (LB, H)

    # ---- constant masks built in-register (contiguous lane groups of DH) ----
    d_i = lax.broadcasted_iota(jnp.int32, (H, NH), 0)
    h_i = lax.broadcasted_iota(jnp.int32, (H, NH), 1)
    in_head = (d_i >= h_i * DH) & (d_i < (h_i + 1) * DH)
    hmask = jnp.where(in_head, jnp.float32(SCALE), jnp.float32(0.0))    # (H, NH), pre-scaled
    h_i2 = lax.broadcasted_iota(jnp.int32, (NH, H), 0)
    d_i2 = lax.broadcasted_iota(jnp.int32, (NH, H), 1)
    in_head2 = (d_i2 >= h_i2 * DH) & (d_i2 < (h_i2 + 1) * DH)
    hmaskT = jnp.where(in_head2, jnp.float32(1.0), jnp.float32(0.0))    # (NH, H)
    # batch-selection matrix: smat[b, l*B + b] = 1   (row parity == batch, B == 2)
    b_i = lax.broadcasted_iota(jnp.int32, (B, LB), 0)
    j_i = lax.broadcasted_iota(jnp.int32, (B, LB), 1)
    smat = jnp.where(jnp.bitwise_and(j_i, 1) == b_i,
                     jnp.float32(1.0), jnp.float32(0.0))                # (B, LB)

    # ------------------------- multi-head attention ------------------------
    qb = jnp.concatenate([q] * L, axis=0)                               # (LB, H)
    scores = jnp.dot(k * qb, hmask, preferred_element_type=f32)         # (LB, NH), scaled

    # shared max shift (softmax is shift-invariant per (b, head); numerically safe here)
    m = jnp.max(scores, axis=0, keepdims=True)                          # (1, NH)
    p = jnp.exp(scores - m)                                             # (LB, NH)
    pe = jnp.dot(p, hmaskT, preferred_element_type=f32)                 # (LB, H) per-lane wts

    # one matmul does both the per-batch value aggregation and the denominator
    stacked = jnp.concatenate([pe * v, pe], axis=1)                     # (LB, 2H)
    red = jnp.dot(smat, stacked, preferred_element_type=f32)            # (B, 2H)
    attn = red[:, 0:H] * pl.reciprocal(red[:, H:2 * H], approx=True)    # (B, H)

    # ------------------ folded out_proj + fc, then abs ----------------------
    y = jnp.dot(attn, w_ofc, preferred_element_type=f32) + b_ofc        # (B, 1)
    out_ref[...] = jnp.abs(y)


def _build_weight_slab(p):
    def put(slab, r, c, block):
        return lax.dynamic_update_slice(slab, block.astype(jnp.float32), (r, c))

    w_ofc = p["w_o"].T @ p["w_fc"].T                       # (H, 1)  fold out_proj+fc
    b_ofc = (p["b_o"] @ p["w_fc"].T + p["b_fc"])[None, :]  # (1, 1)

    slab = jnp.zeros((SLAB_ROWS, SLAB_LANES), jnp.float32)
    slab = put(slab, R_WIH, 0, p["w_ih"].T)                                    # (I, 4H)
    slab = put(slab, R_WHH, 0, p["w_hh"].T)                                    # (H, 4H)
    slab = put(slab, R_BL, 0, (p["b_ih"] + p["b_hh"])[None, :])                # (1, 4H)
    slab = put(slab, R_BPROJ, 0, p["b_proj"][None, :])                         # (1, H)
    slab = put(slab, R_BQKV, 0,
               jnp.concatenate([p["b_q"], p["b_k"], p["b_v"]])[None, :])       # (1, 3H)
    slab = put(slab, R_BOFC, 0, b_ofc)                                         # (1, 1)
    slab = put(slab, R_WPROJ, 0, p["w_proj"].T)                                # (NF, H)
    slab = put(slab, R_WQKV, 0,
               jnp.concatenate([p["w_q"].T, p["w_k"].T, p["w_v"].T, w_ofc], axis=1))  # (H, 3H+1)
    return slab


@jax.jit
def t3_lstm_forward(x, t1, t2, r1, r2, p):
    x_tm = jnp.transpose(x, (1, 0, 2)).reshape(TB, I).astype(jnp.float32)   # (T*B, I) time-major rows
    feats = jnp.stack([t1, t2, r1, r2], axis=-1).astype(jnp.float32)        # (B, NF)
    slab = _build_weight_slab(p)

    out = pl.pallas_call(
        t3_lstm_kernel,
        out_shape=jax.ShapeDtypeStruct((B, 1), jnp.float32),
        in_specs=[pl.BlockSpec(memory_space=pltpu.MemorySpace.VMEM)] * 3,
        out_specs=pl.BlockSpec(memory_space=pltpu.MemorySpace.VMEM),
    )(x_tm, feats, slab)
    return out[:, 0]


def init_params(key):
    ks = jax.random.split(key, 16)
    s = 1.0 / math.sqrt(H)
    u = lambda k, shape: jax.random.uniform(k, shape, jnp.float32, -s, s)
    return dict(
        w_ih=u(ks[0], (4 * H, I)), w_hh=u(ks[1], (4 * H, H)),
        b_ih=u(ks[2], (4 * H,)),   b_hh=u(ks[3], (4 * H,)),
        w_proj=u(ks[4], (H, NF)),  b_proj=u(ks[5], (H,)),
        w_q=u(ks[6], (H, H)), w_k=u(ks[7], (H, H)), w_v=u(ks[8], (H, H)),
        b_q=u(ks[9], (H,)),   b_k=u(ks[10], (H,)),  b_v=u(ks[11], (H,)),
        w_o=u(ks[12], (H, H)), b_o=u(ks[13], (H,)),
        w_fc=u(ks[14], (1, H)), b_fc=u(ks[15], (1,)),
    )


def reference(x, t1, t2, r1, r2, p):
    """Pure-JAX reference mirroring the PyTorch forward."""
    h = jnp.zeros((B, H), jnp.float32)
    c = jnp.zeros((B, H), jnp.float32)
    outs = []
    for t in range(T):
        g = x[:, t, :] @ p["w_ih"].T + p["b_ih"] + h @ p["w_hh"].T + p["b_hh"]
        i_g = jax.nn.sigmoid(g[:, :H]); f_g = jax.nn.sigmoid(g[:, H:2 * H])
        g_g = jnp.tanh(g[:, 2 * H:3 * H]); o_g = jax.nn.sigmoid(g[:, 3 * H:])
        c = f_g * c + i_g * g_g
        h = o_g * jnp.tanh(c)
        outs.append(h)
    lstm_out = jnp.stack(outs, axis=1)                                   # (B, T, H)
    feats = jnp.stack([t1, t2, r1, r2], axis=-1)
    addl = feats @ p["w_proj"].T + p["b_proj"]                           # (B, H)
    comb = jnp.concatenate([lstm_out, addl[:, None, :]], axis=1)         # (B, L, H)
    q = (addl @ p["w_q"].T + p["b_q"]).reshape(B, 1, NH, DH)
    k = (comb @ p["w_k"].T + p["b_k"]).reshape(B, L, NH, DH)
    v = (comb @ p["w_v"].T + p["b_v"]).reshape(B, L, NH, DH)
    scores = jnp.einsum("bqhd,bkhd->bhqk", q, k) / math.sqrt(DH)
    w = jax.nn.softmax(scores, axis=-1)
    att = jnp.einsum("bhqk,bkhd->bqhd", w, v).reshape(B, 1, H)
    att = att[:, 0, :] @ p["w_o"].T + p["b_o"]
    y = att @ p["w_fc"].T + p["b_fc"]
    return jnp.abs(y[:, 0])


if __name__ == "__main__":
    key = jax.random.PRNGKey(0)
    kx, k1, k2, k3, k4, kp = jax.random.split(key, 6)
    x = jax.random.normal(kx, (B, T, I), jnp.float32)
    t1 = jax.random.normal(k1, (B,), jnp.float32)
    t2 = jax.random.normal(k2, (B,), jnp.float32)
    r1 = jax.random.normal(k3, (B,), jnp.float32)
    r2 = jax.random.normal(k4, (B,), jnp.float32)
    params = init_params(kp)

    out = t3_lstm_forward(x, t1, t2, r1, r2, params)
    jax.block_until_ready(out)

    ref = reference(x, t1, t2, r1, r2, params)
    assert out.shape == (B,)
    # tolerance 2e-3: pl.reciprocal(approx=True) in the softmax normalization
    assert jnp.allclose(out, ref, rtol=2e-3, atol=2e-3), (out, ref)
    print("KERNEL_OK")
</pallas_src>

<mosaic_0001>
module attributes {stable_mosaic.version = 11 : i64} {
  func.func @t3_lstm_kernel(%arg0: memref<16x6xf32, #tpu.memory_space<vmem>>, %arg1: memref<2x4xf32, #tpu.memory_space<vmem>>, %arg2: memref<88x128xf32, #tpu.memory_space<vmem>>, %arg3: memref<2x1xf32, #tpu.memory_space<vmem>>) attributes {dimension_semantics = [], scalar_prefetch = 0 : i64, scratch_operands = 0 : i64, tpu.core_type = #tpu.core_type<tc>} {
    %c0 = arith.constant 0 : index
    %c0_0 = arith.constant 0 : index
    %0 = vector.load %arg2[%c0, %c0_0] : memref<88x128xf32, #tpu.memory_space<vmem>>, vector<6x128xf32>
    %c8 = arith.constant 8 : index
    %c0_1 = arith.constant 0 : index
    %1 = vector.load %arg2[%c8, %c0_1] : memref<88x128xf32, #tpu.memory_space<vmem>>, vector<32x128xf32>
    %c40 = arith.constant 40 : index
    %c0_2 = arith.constant 0 : index
    %2 = vector.load %arg2[%c40, %c0_2] : memref<88x128xf32, #tpu.memory_space<vmem>>, vector<1x128xf32>
    %c41 = arith.constant 41 : index
    %c0_3 = arith.constant 0 : index
    %3 = vector.load %arg2[%c41, %c0_3] : memref<88x128xf32, #tpu.memory_space<vmem>>, vector<1x32xf32>
    %c42 = arith.constant 42 : index
    %c0_4 = arith.constant 0 : index
    %4 = vector.load %arg2[%c42, %c0_4] : memref<88x128xf32, #tpu.memory_space<vmem>>, vector<1x96xf32>
    %c43 = arith.constant 43 : index
    %c0_5 = arith.constant 0 : index
    %5 = vector.load %arg2[%c43, %c0_5] : memref<88x128xf32, #tpu.memory_space<vmem>>, vector<1x1xf32>
    %c48 = arith.constant 48 : index
    %c0_6 = arith.constant 0 : index
    %6 = vector.load %arg2[%c48, %c0_6] : memref<88x128xf32, #tpu.memory_space<vmem>>, vector<4x32xf32>
    %c56 = arith.constant 56 : index
    %c0_7 = arith.constant 0 : index
    %7 = vector.load %arg2[%c56, %c0_7] : memref<88x128xf32, #tpu.memory_space<vmem>>, vector<32x96xf32>
    %c56_8 = arith.constant 56 : index
    %c96 = arith.constant 96 : index
    %8 = vector.load %arg2[%c56_8, %c96] : memref<88x128xf32, #tpu.memory_space<vmem>>, vector<32x1xf32>
    %c0_9 = arith.constant 0 : index
    %c0_10 = arith.constant 0 : index
    %9 = vector.load %arg0[%c0_9, %c0_10] : memref<16x6xf32, #tpu.memory_space<vmem>>, vector<16x6xf32>
    %cst = arith.constant dense<0.000000e+00> : vector<16x128xf32>
    %10 = tpu.matmul %9, %0, %cst {dimension_numbers = #tpu.dot_dimension_numbers<[1], [0], [0], [1], [0, 0, 1, 1], [], []>} : vector<16x6xf32>, vector<6x128xf32>, vector<16x128xf32> -> vector<16x128xf32>
    %11 = vector.broadcast %2 : vector<1x128xf32> to vector<16x128xf32>
    %12 = arith.addf %10, %11 : vector<16x128xf32>
    %cst_11 = arith.constant 0.000000e+00 : f32
    %13 = vector.broadcast %cst_11 : f32 to vector<2x32xf32>
    %cst_12 = arith.constant 0.000000e+00 : f32
    %14 = vector.broadcast %cst_12 : f32 to vector<2x32xf32>
    %15 = vector.extract_strided_slice %12 {offsets = [0, 0], sizes = [2, 128], strides = [1, 1]} : vector<16x128xf32> to vector<2x128xf32>
    %cst_13 = arith.constant dense<0.000000e+00> : vector<2x128xf32>
    %16 = tpu.matmul %13, %1, %cst_13 {dimension_numbers = #tpu.dot_dimension_numbers<[1], [0], [0], [1], [0, 0, 1, 1], [], []>} : vector<2x32xf32>, vector<32x128xf32>, vector<2x128xf32> -> vector<2x128xf32>
    %17 = arith.addf %15, %16 : vector<2x128xf32>
    %18 = arith.negf %17 : vector<2x128xf32>
    %19 = math.exp %18 : vector<2x128xf32>
    %cst_14 = arith.constant 1.000000e+00 : f32
    %20 = vector.broadcast %cst_14 : f32 to vector<2x128xf32>
    %21 = arith.addf %20, %19 : vector<2x128xf32>
    %22 = arith.divf %20, %21 : vector<2x128xf32>
    %23 = math.tanh %17 : vector<2x128xf32>
    %24 = vector.extract_strided_slice %22 {offsets = [0, 32], sizes = [2, 32], strides = [1, 1]} : vector<2x128xf32> to vector<2x32xf32>
    %25 = arith.mulf %24, %14 : vector<2x32xf32>
    %26 = vector.extract_strided_slice %22 {offsets = [0, 0], sizes = [2, 32], strides = [1, 1]} : vector<2x128xf32> to vector<2x32xf32>
    %27 = vector.extract_strided_slice %23 {offsets = [0, 64], sizes = [2, 32], strides = [1, 1]} : vector<2x128xf32> to vector<2x32xf32>
    %28 = arith.mulf %26, %27 : vector<2x32xf32>
    %29 = arith.addf %25, %28 : vector<2x32xf32>
    %30 = vector.extract_strided_slice %22 {offsets = [0, 96], sizes = [2, 32], strides = [1, 1]} : vector<2x128xf32> to vector<2x32xf32>
    %31 = math.tanh %29 : vector<2x32xf32>
    %32 = arith.mulf %30, %31 : vector<2x32xf32>
    %33 = vector.extract_strided_slice %12 {offsets = [2, 0], sizes = [2, 128], strides = [1, 1]} : vector<16x128xf32> to vector<2x128xf32>
    %cst_15 = arith.constant dense<0.000000e+00> : vector<2x128xf32>
    %34 = tpu.matmul %32, %1, %cst_15 {dimension_numbers = #tpu.dot_dimension_numbers<[1], [0], [0], [1], [0, 0, 1, 1], [], []>} : vector<2x32xf32>, vector<32x128xf32>, vector<2x128xf32> -> vector<2x128xf32>
    %35 = arith.addf %33, %34 : vector<2x128xf32>
    %36 = arith.negf %35 : vector<2x128xf32>
    %37 = math.exp %36 : vector<2x128xf32>
    %cst_16 = arith.constant 1.000000e+00 : f32
    %38 = vector.broadcast %cst_16 : f32 to vector<2x128xf32>
    %39 = arith.addf %38, %37 : vector<2x128xf32>
    %40 = arith.divf %38, %39 : vector<2x128xf32>
    %41 = math.tanh %35 : vector<2x128xf32>
    %42 = vector.extract_strided_slice %40 {offsets = [0, 32], sizes = [2, 32], strides = [1, 1]} : vector<2x128xf32> to vector<2x32xf32>
    %43 = arith.mulf %42, %29 : vector<2x32xf32>
    %44 = vector.extract_strided_slice %40 {offsets = [0, 0], sizes = [2, 32], strides = [1, 1]} : vector<2x128xf32> to vector<2x32xf32>
    %45 = vector.extract_strided_slice %41 {offsets = [0, 64], sizes = [2, 32], strides = [1, 1]} : vector<2x128xf32> to vector<2x32xf32>
    %46 = arith.mulf %44, %45 : vector<2x32xf32>
    %47 = arith.addf %43, %46 : vector<2x32xf32>
    %48 = vector.extract_strided_slice %40 {offsets = [0, 96], sizes = [2, 32], strides = [1, 1]} : vector<2x128xf32> to vector<2x32xf32>
    %49 = math.tanh %47 : vector<2x32xf32>
    %50 = arith.mulf %48, %49 : vector<2x32xf32>
    %51 = vector.extract_strided_slice %12 {offsets = [4, 0], sizes = [2, 128], strides = [1, 1]} : vector<16x128xf32> to vector<2x128xf32>
    %cst_17 = arith.constant dense<0.000000e+00> : vector<2x128xf32>
    %52 = tpu.matmul %50, %1, %cst_17 {dimension_numbers = #tpu.dot_dimension_numbers<[1], [0], [0], [1], [0, 0, 1, 1], [], []>} : vector<2x32xf32>, vector<32x128xf32>, vector<2x128xf32> -> vector<2x128xf32>
    %53 = arith.addf %51, %52 : vector<2x128xf32>
    %54 = arith.negf %53 : vector<2x128xf32>
    %55 = math.exp %54 : vector<2x128xf32>
    %cst_18 = arith.constant 1.000000e+00 : f32
    %56 = vector.broadcast %cst_18 : f32 to vector<2x128xf32>
    %57 = arith.addf %56, %55 : vector<2x128xf32>
    %58 = arith.divf %56, %57 : vector<2x128xf32>
    %59 = math.tanh %53 : vector<2x128xf32>
    %60 = vector.extract_strided_slice %58 {offsets = [0, 32], sizes = [2, 32], strides = [1, 1]} : vector<2x128xf32> to vector<2x32xf32>
    %61 = arith.mulf %60, %47 : vector<2x32xf32>
    %62 = vector.extract_strided_slice %58 {offsets = [0, 0], sizes = [2, 32], strides = [1, 1]} : vector<2x128xf32> to vector<2x32xf32>
    %63 = vector.extract_strided_slice %59 {offsets = [0, 64], sizes = [2, 32], strides = [1, 1]} : vector<2x128xf32> to vector<2x32xf32>
    %64 = arith.mulf %62, %63 : vector<2x32xf32>
    %65 = arith.addf %61, %64 : vector<2x32xf32>
    %66 = vector.extract_strided_slice %58 {offsets = [0, 96], sizes = [2, 32], strides = [1, 1]} : vector<2x128xf32> to vector<2x32xf32>
    %67 = math.tanh %65 : vector<2x32xf32>
    %68 = arith.mulf %66, %67 : vector<2x32xf32>
    %69 = vector.extract_strided_slice %12 {offsets = [6, 0], sizes = [2, 128], strides = [1, 1]} : vector<16x128xf32> to vector<2x128xf32>
    %cst_19 = arith.constant dense<0.000000e+00> : vector<2x128xf32>
    %70 = tpu.matmul %68, %1, %cst_19 {dimension_numbers = #tpu.dot_dimension_numbers<[1], [0], [0], [1], [0, 0, 1, 1], [], []>} : vector<2x32xf32>, vector<32x128xf32>, vector<2x128xf32> -> vector<2x128xf32>
    %71 = arith.addf %69, %70 : vector<2x128xf32>
    %72 = arith.negf %71 : vector<2x128xf32>
    %73 = math.exp %72 : vector<2x128xf32>
    %cst_20 = arith.constant 1.000000e+00 : f32
    %74 = vector.broadcast %cst_20 : f32 to vector<2x128xf32>
    %75 = arith.addf %74, %73 : vector<2x128xf32>
    %76 = arith.divf %74, %75 : vector<2x128xf32>
    %77 = math.tanh %71 : vector<2x128xf32>
    %78 = vector.extract_strided_slice %76 {offsets = [0, 32], sizes = [2, 32], strides = [1, 1]} : vector<2x128xf32> to vector<2x32xf32>
    %79 = arith.mulf %78, %65 : vector<2x32xf32>
    %80 = vector.extract_strided_slice %76 {offsets = [0, 0], sizes = [2, 32], strides = [1, 1]} : vector<2x128xf32> to vector<2x32xf32>
    %81 = vector.extract_strided_slice %77 {offsets = [0, 64], sizes = [2, 32], strides = [1, 1]} : vector<2x128xf32> to vector<2x32xf32>
    %82 = arith.mulf %80, %81 : vector<2x32xf32>
    %83 = arith.addf %79, %82 : vector<2x32xf32>
    %84 = vector.extract_strided_slice %76 {offsets = [0, 96], sizes = [2, 32], strides = [1, 1]} : vector<2x128xf32> to vector<2x32xf32>
    %85 = math.tanh %83 : vector<2x32xf32>
    %86 = arith.mulf %84, %85 : vector<2x32xf32>
    %87 = vector.extract_strided_slice %12 {offsets = [8, 0], sizes = [2, 128], strides = [1, 1]} : vector<16x128xf32> to vector<2x128xf32>
    %cst_21 = arith.constant dense<0.000000e+00> : vector<2x128xf32>
    %88 = tpu.matmul %86, %1, %cst_21 {dimension_numbers = #tpu.dot_dimension_numbers<[1], [0], [0], [1], [0, 0, 1, 1], [], []>} : vector<2x32xf32>, vector<32x128xf32>, vector<2x128xf32> -> vector<2x128xf32>
    %89 = arith.addf %87, %88 : vector<2x128xf32>
    %90 = arith.negf %89 : vector<2x128xf32>
    %91 = math.exp %90 : vector<2x128xf32>
    %cst_22 = arith.constant 1.000000e+00 : f32
    %92 = vector.broadcast %cst_22 : f32 to vector<2x128xf32>
    %93 = arith.addf %92, %91 : vector<2x128xf32>
    %94 = arith.divf %92, %93 : vector<2x128xf32>
    %95 = math.tanh %89 : vector<2x128xf32>
    %96 = vector.extract_strided_slice %94 {offsets = [0, 32], sizes = [2, 32], strides = [1, 1]} : vector<2x128xf32> to vector<2x32xf32>
    %97 = arith.mulf %96, %83 : vector<2x32xf32>
    %98 = vector.extract_strided_slice %94 {offsets = [0, 0], sizes = [2, 32], strides = [1, 1]} : vector<2x128xf32> to vector<2x32xf32>
    %99 = vector.extract_strided_slice %95 {offsets = [0, 64], sizes = [2, 32], strides = [1, 1]} : vector<2x128xf32> to vector<2x32xf32>
    %100 = arith.mulf %98, %99 : vector<2x32xf32>
    %101 = arith.addf %97, %100 : vector<2x32xf32>
    %102 = vector.extract_strided_slice %94 {offsets = [0, 96], sizes = [2, 32], strides = [1, 1]} : vector<2x128xf32> to vector<2x32xf32>
    %103 = math.tanh %101 : vector<2x32xf32>
    %104 = arith.mulf %102, %103 : vector<2x32xf32>
    %105 = vector.extract_strided_slice %12 {offsets = [10, 0], sizes = [2, 128], strides = [1, 1]} : vector<16x128xf32> to vector<2x128xf32>
    %cst_23 = arith.constant dense<0.000000e+00> : vector<2x128xf32>
    %106 = tpu.matmul %104, %1, %cst_23 {dimension_numbers = #tpu.dot_dimension_numbers<[1], [0], [0], [1], [0, 0, 1, 1], [], []>} : vector<2x32xf32>, vector<32x128xf32>, vector<2x128xf32> -> vector<2x128xf32>
    %107 = arith.addf %105, %106 : vector<2x128xf32>
    %108 = arith.negf %107 : vector<2x128xf32>
    %109 = math.exp %108 : vector<2x128xf32>
    %cst_24 = arith.constant 1.000000e+00 : f32
    %110 = vector.broadcast %cst_24 : f32 to vector<2x128xf32>
    %111 = arith.addf %110, %109 : vector<2x128xf32>
    %112 = arith.divf %110, %111 : vector<2x128xf32>
    %113 = math.tanh %107 : vector<2x128xf32>
    %114 = vector.extract_strided_slice %112 {offsets = [0, 32], sizes = [2, 32], strides = [1, 1]} : vector<2x128xf32> to vector<2x32xf32>
    %115 = arith.mulf %114, %101 : vector<2x32xf32>
    %116 = vector.extract_strided_slice %112 {offsets = [0, 0], sizes = [2, 32], strides = [1, 1]} : vector<2x128xf32> to vector<2x32xf32>
    %117 = vector.extract_strided_slice %113 {offsets = [0, 64], sizes = [2, 32], strides = [1, 1]} : vector<2x128xf32> to vector<2x32xf32>
    %118 = arith.mulf %116, %117 : vector<2x32xf32>
    %119 = arith.addf %115, %118 : vector<2x32xf32>
    %120 = vector.extract_strided_slice %112 {offsets = [0, 96], sizes = [2, 32], strides = [1, 1]} : vector<2x128xf32> to vector<2x32xf32>
    %121 = math.tanh %119 : vector<2x32xf32>
    %122 = arith.mulf %120, %121 : vector<2x32xf32>
    %123 = vector.extract_strided_slice %12 {offsets = [12, 0], sizes = [2, 128], strides = [1, 1]} : vector<16x128xf32> to vector<2x128xf32>
    %cst_25 = arith.constant dense<0.000000e+00> : vector<2x128xf32>
    %124 = tpu.matmul %122, %1, %cst_25 {dimension_numbers = #tpu.dot_dimension_numbers<[1], [0], [0], [1], [0, 0, 1, 1], [], []>} : vector<2x32xf32>, vector<32x128xf32>, vector<2x128xf32> -> vector<2x128xf32>
    %125 = arith.addf %123, %124 : vector<2x128xf32>
    %126 = arith.negf %125 : vector<2x128xf32>
    %127 = math.exp %126 : vector<2x128xf32>
    %cst_26 = arith.constant 1.000000e+00 : f32
    %128 = vector.broadcast %cst_26 : f32 to vector<2x128xf32>
    %129 = arith.addf %128, %127 : vector<2x128xf32>
    %130 = arith.divf %128, %129 : vector<2x128xf32>
    %131 = math.tanh %125 : vector<2x128xf32>
    %132 = vector.extract_strided_slice %130 {offsets = [0, 32], sizes = [2, 32], strides = [1, 1]} : vector<2x128xf32> to vector<2x32xf32>
    %133 = arith.mulf %132, %119 : vector<2x32xf32>
    %134 = vector.extract_strided_slice %130 {offsets = [0, 0], sizes = [2, 32], strides = [1, 1]} : vector<2x128xf32> to vector<2x32xf32>
    %135 = vector.extract_strided_slice %131 {offsets = [0, 64], sizes = [2, 32], strides = [1, 1]} : vector<2x128xf32> to vector<2x32xf32>
    %136 = arith.mulf %134, %135 : vector<2x32xf32>
    %137 = arith.addf %133, %136 : vector<2x32xf32>
    %138 = vector.extract_strided_slice %130 {offsets = [0, 96], sizes = [2, 32], strides = [1, 1]} : vector<2x128xf32> to vector<2x32xf32>
    %139 = math.tanh %137 : vector<2x32xf32>
    %140 = arith.mulf %138, %139 : vector<2x32xf32>
    %141 = vector.extract_strided_slice %12 {offsets = [14, 0], sizes = [2, 128], strides = [1, 1]} : vector<16x128xf32> to vector<2x128xf32>
    %cst_27 = arith.constant dense<0.000000e+00> : vector<2x128xf32>
    %142 = tpu.matmul %140, %1, %cst_27 {dimension_numbers = #tpu.dot_dimension_numbers<[1], [0], [0], [1], [0, 0, 1, 1], [], []>} : vector<2x32xf32>, vector<32x128xf32>, vector<2x128xf32> -> vector<2x128xf32>
    %143 = arith.addf %141, %142 : vector<2x128xf32>
    %144 = arith.negf %143 : vector<2x128xf32>
    %145 = math.exp %144 : vector<2x128xf32>
    %cst_28 = arith.constant 1.000000e+00 : f32
    %146 = vector.broadcast %cst_28 : f32 to vector<2x128xf32>
    %147 = arith.addf %146, %145 : vector<2x128xf32>
    %148 = arith.divf %146, %147 : vector<2x128xf32>
    %149 = math.tanh %143 : vector<2x128xf32>
    %150 = vector.extract_strided_slice %148 {offsets = [0, 32], sizes = [2, 32], strides = [1, 1]} : vector<2x128xf32> to vector<2x32xf32>
    %151 = arith.mulf %150, %137 : vector<2x32xf32>
    %152 = vector.extract_strided_slice %148 {offsets = [0, 0], sizes = [2, 32], strides = [1, 1]} : vector<2x128xf32> to vector<2x32xf32>
    %153 = vector.extract_strided_slice %149 {offsets = [0, 64], sizes = [2, 32], strides = [1, 1]} : vector<2x128xf32> to vector<2x32xf32>
    %154 = arith.mulf %152, %153 : vector<2x32xf32>
    %155 = arith.addf %151, %154 : vector<2x32xf32>
    %156 = vector.extract_strided_slice %148 {offsets = [0, 96], sizes = [2, 32], strides = [1, 1]} : vector<2x128xf32> to vector<2x32xf32>
    %157 = math.tanh %155 : vector<2x32xf32>
    %158 = arith.mulf %156, %157 : vector<2x32xf32>
    %c0_29 = arith.constant 0 : index
    %c0_30 = arith.constant 0 : index
    %159 = vector.load %arg1[%c0_29, %c0_30] : memref<2x4xf32, #tpu.memory_space<vmem>>, vector<2x4xf32>
    %cst_31 = arith.constant dense<0.000000e+00> : vector<2x32xf32>
    %160 = tpu.matmul %159, %6, %cst_31 {dimension_numbers = #tpu.dot_dimension_numbers<[1], [0], [0], [1], [0, 0, 1, 1], [], []>} : vector<2x4xf32>, vector<4x32xf32>, vector<2x32xf32> -> vector<2x32xf32>
    %161 = vector.broadcast %3 : vector<1x32xf32> to vector<2x32xf32>
    %162 = arith.addf %160, %161 : vector<2x32xf32>
    %163 = tpu.concatenate %32, %50, %68, %86, %104, %122, %140, %158, %162 in 0 : vector<2x32xf32>, vector<2x32xf32>, vector<2x32xf32>, vector<2x32xf32>, vector<2x32xf32>, vector<2x32xf32>, vector<2x32xf32>, vector<2x32xf32>, vector<2x32xf32> -> vector<18x32xf32>
    %cst_32 = arith.constant dense<0.000000e+00> : vector<18x96xf32>
    %164 = tpu.matmul %163, %7, %cst_32 {dimension_numbers = #tpu.dot_dimension_numbers<[1], [0], [0], [1], [0, 0, 1, 1], [], []>} : vector<18x32xf32>, vector<32x96xf32>, vector<18x96xf32> -> vector<18x96xf32>
    %165 = vector.broadcast %4 : vector<1x96xf32> to vector<18x96xf32>
    %166 = arith.addf %164, %165 : vector<18x96xf32>
    %167 = vector.extract_strided_slice %166 {offsets = [16, 0], sizes = [2, 32], strides = [1, 1]} : vector<18x96xf32> to vector<2x32xf32>
    %168 = vector.extract_strided_slice %166 {offsets = [0, 32], sizes = [18, 32], strides = [1, 1]} : vector<18x96xf32> to vector<18x32xf32>
    %169 = vector.extract_strided_slice %166 {offsets = [0, 64], sizes = [18, 32], strides = [1, 1]} : vector<18x96xf32> to vector<18x32xf32>
    %170 = tpu.iota {dimensions = array<i32: 0>} : vector<32x8xi32>
    %171 = tpu.iota {dimensions = array<i32: 1>} : vector<32x8xi32>
    %c4_i32 = arith.constant 4 : i32
    %172 = vector.broadcast %c4_i32 : i32 to vector<32x8xi32>
    %173 = arith.muli %171, %172 : vector<32x8xi32>
    %174 = arith.cmpi sge, %170, %173 : vector<32x8xi32>
    %c1_i32 = arith.constant 1 : i32
    %175 = vector.broadcast %c1_i32 : i32 to vector<32x8xi32>
    %176 = arith.addi %171, %175 : vector<32x8xi32>
    %c4_i32_33 = arith.constant 4 : i32
    %177 = vector.broadcast %c4_i32_33 : i32 to vector<32x8xi32>
    %178 = arith.muli %176, %177 : vector<32x8xi32>
    %179 = arith.cmpi slt, %170, %178 : vector<32x8xi32>
    %180 = arith.andi %174, %179 : vector<32x8xi1>
    %cst_34 = arith.constant 5.000000e-01 : f32
    %cst_35 = arith.constant 0.000000e+00 : f32
    %181 = vector.broadcast %cst_34 : f32 to vector<32x8xf32>
    %182 = vector.broadcast %cst_35 : f32 to vector<32x8xf32>
    %183 = arith.select %180, %181, %182 : vector<32x8xi1>, vector<32x8xf32>
    %184 = tpu.iota {dimensions = array<i32: 0>} : vector<8x32xi32>
    %185 = tpu.iota {dimensions = array<i32: 1>} : vector<8x32xi32>
    %c4_i32_36 = arith.constant 4 : i32
    %186 = vector.broadcast %c4_i32_36 : i32 to vector<8x32xi32>
    %187 = arith.muli %184, %186 : vector<8x32xi32>
    %188 = arith.cmpi sge, %185, %187 : vector<8x32xi32>
    %c1_i32_37 = arith.constant 1 : i32
    %189 = vector.broadcast %c1_i32_37 : i32 to vector<8x32xi32>
    %190 = arith.addi %184, %189 : vector<8x32xi32>
    %c4_i32_38 = arith.constant 4 : i32
    %191 = vector.broadcast %c4_i32_38 : i32 to vector<8x32xi32>
    %192 = arith.muli %190, %191 : vector<8x32xi32>
    %193 = arith.cmpi slt, %185, %192 : vector<8x32xi32>
    %194 = arith.andi %188, %193 : vector<8x32xi1>
    %cst_39 = arith.constant 1.000000e+00 : f32
    %cst_40 = arith.constant 0.000000e+00 : f32
    %195 = vector.broadcast %cst_39 : f32 to vector<8x32xf32>
    %196 = vector.broadcast %cst_40 : f32 to vector<8x32xf32>
    %197 = arith.select %194, %195, %196 : vector<8x32xi1>, vector<8x32xf32>
    %198 = tpu.iota {dimensions = array<i32: 0>} : vector<2x18xi32>
    %199 = tpu.iota {dimensions = array<i32: 1>} : vector<2x18xi32>
    %c1_i32_41 = arith.constant 1 : i32
    %200 = vector.broadcast %c1_i32_41 : i32 to vector<2x18xi32>
    %201 = arith.andi %199, %200 : vector<2x18xi32>
    %202 = arith.cmpi eq, %201, %198 : vector<2x18xi32>
    %cst_42 = arith.constant 1.000000e+00 : f32
    %cst_43 = arith.constant 0.000000e+00 : f32
    %203 = vector.broadcast %cst_42 : f32 to vector<2x18xf32>
    %204 = vector.broadcast %cst_43 : f32 to vector<2x18xf32>
    %205 = arith.select %202, %203, %204 : vector<2x18xi1>, vector<2x18xf32>
    %206 = tpu.concatenate %167, %167, %167, %167, %167, %167, %167, %167, %167 in 0 : vector<2x32xf32>, vector<2x32xf32>, vector<2x32xf32>, vector<2x32xf32>, vector<2x32xf32>, vector<2x32xf32>, vector<2x32xf32>, vector<2x32xf32>, vector<2x32xf32> -> vector<18x32xf32>
    %207 = arith.mulf %168, %206 : vector<18x32xf32>
    %cst_44 = arith.constant dense<0.000000e+00> : vector<18x8xf32>
    %208 = tpu.matmul %207, %183, %cst_44 {dimension_numbers = #tpu.dot_dimension_numbers<[1], [0], [0], [1], [0, 0, 1, 1], [], []>} : vector<18x32xf32>, vector<32x8xf32>, vector<18x8xf32> -> vector<18x8xf32>
    %cst_45 = arith.constant dense<0xFF800000> : vector<8xf32>
    %209 = vector.multi_reduction <maximumf>, %208, %cst_45 [0] : vector<18x8xf32> to vector<8xf32>
    %210 = vector.shape_cast %209 : vector<8xf32> to vector<1x8xf32>
    %211 = vector.broadcast %210 : vector<1x8xf32> to vector<18x8xf32>
    %212 = arith.subf %208, %211 : vector<18x8xf32>
    %213 = math.exp %212 : vector<18x8xf32>
    %cst_46 = arith.constant dense<0.000000e+00> : vector<18x32xf32>
    %214 = tpu.matmul %213, %197, %cst_46 {dimension_numbers = #tpu.dot_dimension_numbers<[1], [0], [0], [1], [0, 0, 1, 1], [], []>} : vector<18x8xf32>, vector<8x32xf32>, vector<18x32xf32> -> vector<18x32xf32>
    %215 = arith.mulf %214, %169 : vector<18x32xf32>
    %216 = tpu.concatenate %215, %214 in 1 : vector<18x32xf32>, vector<18x32xf32> -> vector<18x64xf32>
    %cst_47 = arith.constant dense<0.000000e+00> : vector<2x64xf32>
    %217 = tpu.matmul %205, %216, %cst_47 {dimension_numbers = #tpu.dot_dimension_numbers<[1], [0], [0], [1], [0, 0, 1, 1], [], []>} : vector<2x18xf32>, vector<18x64xf32>, vector<2x64xf32> -> vector<2x64xf32>
    %218 = vector.extract_strided_slice %217 {offsets = [0, 0], sizes = [2, 32], strides = [1, 1]} : vector<2x64xf32> to vector<2x32xf32>
    %219 = vector.extract_strided_slice %217 {offsets = [0, 32], sizes = [2, 32], strides = [1, 1]} : vector<2x64xf32> to vector<2x32xf32>
    %220 = tpu.reciprocal %219 {approx = true} : vector<2x32xf32> -> vector<2x32xf32>
    %221 = arith.mulf %218, %220 : vector<2x32xf32>
    %cst_48 = arith.constant dense<0.000000e+00> : vector<2x1xf32>
    %222 = tpu.matmul %221, %8, %cst_48 {dimension_numbers = #tpu.dot_dimension_numbers<[1], [0], [0], [1], [0, 0, 1, 1], [], []>} : vector<2x32xf32>, vector<32x1xf32>, vector<2x1xf32> -> vector<2x1xf32>
    %223 = vector.broadcast %5 : vector<1x1xf32> to vector<2x1xf32>
    %224 = arith.addf %222, %223 : vector<2x1xf32>
    %225 = math.absf %224 : vector<2x1xf32>
    %c0_49 = arith.constant 0 : index
    %c0_50 = arith.constant 0 : index
    %226 = vector.load %arg3[%c0_49, %c0_50] : memref<2x1xf32, #tpu.memory_space<vmem>>, vector<2x1xf32>
    tpu.vector_store %arg3[%c0_49, %c0_50], %225 {strides = array<i32>} : memref<2x1xf32, #tpu.memory_space<vmem>>, vector<2x1xf32>,
    return
  }
}

</mosaic_0001>

<llo_original>
// kernel: t3_lstm_forward.1
$region0: #{t3_lstm_forward.1}
  #allocation0 [shape = 'u32[]', space=smem, size = 0x4, offset = 0x4, fixed_abs, tag = 'smem constant byte address 0x4 - core index']
  #allocation1 [shape = 'u32[144,128]{1,0:T(1,128)}', space=vmem, size = 0x12000, scoped, tag = 'internal scratch']
  %s0 = inlined_call_operand.vmem [shape: f32[16,6], index: 0, kind: input, shape index: {}]
  %s1 = inlined_call_operand.vmem [shape: f32[2,4], index: 1, kind: input, shape index: {}]
  %s2 = inlined_call_operand.vmem [shape: f32[88,128], index: 2, kind: input, shape index: {}]
  %s3 = inlined_call_operand.vmem [shape: f32[2,1], index: 3, kind: output, shape index: {}]
  %s4 = sld [smem:[#allocation0]]
  $region22: #{t3_lstm_forward.1} parent=0
    _
  %s6 = ssub.s32 1, %s4
  %s7 = scalar_select 0, %s6, %s4
  // Predicated region
  $region2: #{t3_lstm_forward.1} parent=0 // pred_check
    _
  $region3: #{t3_lstm_forward.1} parent=0 // pred_check_branch
    %9 = sbr.rel (0) target = $region5
  $region4: #{t3_lstm_forward.1} parent=0 // pred_region
    _
  $region5: #{t3_lstm_forward.1} parent=0 // pred_fallthru
    _
  // Predicated region
  $region6: #{t3_lstm_forward.1} parent=0 // pred_check
    _
  $region7: #{t3_lstm_forward.1} parent=0 // pred_check_branch
    %11 = sbr.rel (0) target = $region9
  $region8: #{t3_lstm_forward.1} parent=0 // pred_region
    _
  $region9: #{t3_lstm_forward.1} parent=0 // pred_fallthru
    _
  // Predicated region
  $region10: #{t3_lstm_forward.1} parent=0 // pred_check
    _
  $region11: #{t3_lstm_forward.1} parent=0 // pred_check_branch
    %13 = sbr.rel (0) target = $region13
  $region12: #{t3_lstm_forward.1} parent=0 // pred_region
    _
  $region13: #{t3_lstm_forward.1} parent=0 // pred_fallthru
    _
  %v14 = vld [vmem:[%s2] sm:$0x3f]
  %v15 = vld [vmem:[%s2 + $0x8] sm:$0xff]
  %v16 = vld [vmem:[%s2 + $0x10] sm:$0xff]
  %v17 = vld [vmem:[%s2 + $0x18] sm:$0xff]
  %v18 = vld [vmem:[%s2 + $0x20] sm:$0xff]
  %v19 = vld [vmem:[%s2 + $0x28] sm:$0x1]
  %v20 = vld [vmem:[%s2 + $0x29] sm:$0x1]
  %v21 = vld [vmem:[%s2 + $0x2a] sm:$0x1]
  %v22 = vld [vmem:[%s2 + $0x2b] sm:$0x1]
  %v23 = vld [vmem:[%s2 + $0x30] sm:$0xf]
  %v24 = vld [vmem:[%s2 + $0x38] sm:$0xff]
  %v25 = vld [vmem:[%s2 + $0x40] sm:$0xff]
  %v26 = vld [vmem:[%s2 + $0x48] sm:$0xff]
  %v27 = vld [vmem:[%s2 + $0x50] sm:$0xff]
  %v28 = vld [vmem:[%s0] sm:$0xff]
  %v29 = vld [vmem:[%s0 + $0x8] sm:$0xff]
  %v30 = vlaneseq
  %v31 = vshrl.u32 %v30, 7
  %v32 = vsub.s32 0, %v31
  %v33 = vrot.slane %v19, %v32
  %vm34 = vcmask 48128
  %v36 = vsel %vm34, %v28, 0
  %v39 = vsel %vm34, %v29, 0
  %vm41 = vcmask 1045504
  %v43 = vsel %vm41, %v14, 0
  %45 = vmatprep.subr.mxu0 0.0
  %46 = vmatpush1.msra.mxu0 0.0
  %47 = vmatprep.subr.mxu0 0.0
  %48 = vmatpush1.msra.mxu0 0.0
  %49 = vmatprep.subr.mxu0 0.0
  %50 = vmatpush1.msra.mxu0 0.0
  %51 = vmatprep.subr.mxu0 0.0
  %52 = vmatpush1.msra.mxu0 0.0
  %53 = vmatprep.subr.mxu0 0.0
  %54 = vmatpush1.msra.mxu0 0.0
  %55 = vmatprep.subr.mxu0 0.0
  %56 = vmatpush1.msra.mxu0 0.0
  %57 = vmatprep.subr.mxu0 0.0
  %58 = vmatpush1.msra.mxu0 0.0
  %59 = vmatprep.subr.mxu0 0.0
  %60 = vmatpush1.msra.mxu0 0.0
  %61 = vmatprep.subr.mxu0 0.0
  %62 = vmatpush1.msra.mxu0 0.0
  %63 = vmatprep.subr.mxu0 0.0
  %64 = vmatpush1.msra.mxu0 0.0
  %65 = vmatprep.subr.mxu0 0.0
  %66 = vmatpush1.msra.mxu0 0.0
  %67 = vmatprep.subr.mxu0 0.0
  %68 = vmatpush1.msra.mxu0 0.0
  %69 = vmatprep.subr.mxu0 0.0
  %70 = vmatpush1.msra.mxu0 0.0
  %71 = vmatprep.subr.mxu0 0.0
  %72 = vmatpush1.msra.mxu0 0.0
  %73 = vmatprep.subr.mxu0 0.0
  %74 = vmatpush1.msra.mxu0 0.0
  %75 = vmatprep.subr.mxu0 0.0
  %76 = vmatpush1.msra.mxu0 %v43
  %77 = vmatprep.subr.mxu0 0.0
  %78 = vmatpush2.msra.mxu0 0.0
  %79 = vmatprep.subr.mxu0 0.0
  %80 = vmatpush2.msra.mxu0 0.0
  %81 = vmatprep.subr.mxu0 0.0
  %82 = vmatpush2.msra.mxu0 0.0
  %83 = vmatprep.subr.mxu0 0.0
  %84 = vmatpush2.msra.mxu0 0.0
  %85 = vmatprep.subr.mxu0 0.0
  %86 = vmatpush2.msra.mxu0 0.0
  %87 = vmatprep.subr.mxu0 0.0
  %88 = vmatpush2.msra.mxu0 0.0
  %89 = vmatprep.subr.mxu0 0.0
  %90 = vmatpush2.msra.mxu0 0.0
  %91 = vmatprep.subr.mxu0 0.0
  %92 = vmatpush2.msra.mxu0 0.0
  %93 = vmatprep.subr.mxu0 0.0
  %94 = vmatpush2.msra.mxu0 0.0
  %95 = vmatprep.subr.mxu0 0.0
  %96 = vmatpush2.msra.mxu0 0.0
  %97 = vmatprep.subr.mxu0 0.0
  %98 = vmatpush2.msra.mxu0 0.0
  %99 = vmatprep.subr.mxu0 0.0
  %100 = vmatpush2.msra.mxu0 0.0
  %101 = vmatprep.subr.mxu0 0.0
  %102 = vmatpush2.msra.mxu0 0.0
  %103 = vmatprep.subr.mxu0 0.0
  %104 = vmatpush2.msra.mxu0 0.0
  %105 = vmatprep.subr.mxu0 0.0
  %106 = vmatpush2.msra.mxu0 0.0
  %107 = vmatprep.subr.mxu0 0.0
  %108 = vmatpush2.msra.mxu0 0.0
  %109 = vmatprep.mubr.f32.mxu0 0.0
  %110 = vmatmul.mubr.f32.gmra.mxu0 %v36
  %v111 = vpop.f32.mrf.mxu0
  %v112 = vadd.f32 %v33, %v111
  %v113 = vpop.f32.mrf.mxu0
  %114 = vmatprep.mubr.f32.mxu0 0.0
  %115 = vmatmul.mubr.f32.gmra.mxu0 %v39
  %v116 = vpop.f32.mrf.mxu0
  %v117 = vadd.f32 %v33, %v116
  %v118 = vpop.f32.mrf.mxu0
  %119 = vdwg.mxu0
  %vm120 = vcmask 261120
  %v122 = vsel %vm120, 0.0, 0
  %124 = vmatprep.subr.mxu0 0.0
  %125 = vmatpush1.msra.mxu0 0.0
  %126 = vmatprep.subr.mxu0 0.0
  %127 = vmatpush1.msra.mxu0 0.0
  %128 = vmatprep.subr.mxu0 0.0
  %129 = vmatpush1.msra.mxu0 0.0
  %130 = vmatprep.subr.mxu0 0.0
  %131 = vmatpush1.msra.mxu0 0.0
  %132 = vmatprep.subr.mxu0 0.0
  %133 = vmatpush1.msra.mxu0 0.0
  %134 = vmatprep.subr.mxu0 0.0
  %135 = vmatpush1.msra.mxu0 0.0
  %136 = vmatprep.subr.mxu0 0.0
  %137 = vmatpush1.msra.mxu0 0.0
  %138 = vmatprep.subr.mxu0 0.0
  %139 = vmatpush1.msra.mxu0 0.0
  %140 = vmatprep.subr.mxu0 0.0
  %141 = vmatpush1.msra.mxu0 0.0
  %142 = vmatprep.subr.mxu0 0.0
  %143 = vmatpush1.msra.mxu0 0.0
  %144 = vmatprep.subr.mxu0 0.0
  %145 = vmatpush1.msra.mxu0 0.0
  %146 = vmatprep.subr.mxu0 0.0
  %147 = vmatpush1.msra.mxu0 0.0
  %148 = vmatprep.subr.mxu0 0.0
  %149 = vmatpush1.msra.mxu0 %v18
  %150 = vmatprep.subr.mxu0 0.0
  %151 = vmatpush1.msra.mxu0 %v17
  %152 = vmatprep.subr.mxu0 0.0
  %153 = vmatpush1.msra.mxu0 %v16
  %154 = vmatprep.subr.mxu0 0.0
  %155 = vmatpush1.msra.mxu0 %v15
  %156 = vmatprep.subr.mxu0 0.0
  %157 = vmatpush2.msra.mxu0 0.0
  %158 = vmatprep.subr.mxu0 0.0
  %159 = vmatpush2.msra.mxu0 0.0
  %160 = vmatprep.subr.mxu0 0.0
  %161 = vmatpush2.msra.mxu0 0.0
  %162 = vmatprep.subr.mxu0 0.0
  %163 = vmatpush2.msra.mxu0 0.0
  %164 = vmatprep.subr.mxu0 0.0
  %165 = vmatpush2.msra.mxu0 0.0
  %166 = vmatprep.subr.mxu0 0.0
  %167 = vmatpush2.msra.mxu0 0.0
  %168 = vmatprep.subr.mxu0 0.0
  %169 = vmatpush2.msra.mxu0 0.0
  %170 = vmatprep.subr.mxu0 0.0
  %171 = vmatpush2.msra.mxu0 0.0
  %172 = vmatprep.subr.mxu0 0.0
  %173 = vmatpush2.msra.mxu0 0.0
  %174 = vmatprep.subr.mxu0 0.0
  %175 = vmatpush2.msra.mxu0 0.0
  %176 = vmatprep.subr.mxu0 0.0
  %177 = vmatpush2.msra.mxu0 0.0
  %178 = vmatprep.subr.mxu0 0.0
  %179 = vmatpush2.msra.mxu0 0.0
  %180 = vmatprep.subr.mxu0 0.0
  %181 = vmatpush2.msra.mxu0 0.0
  %182 = vmatprep.subr.mxu0 0.0
  %183 = vmatpush2.msra.mxu0 0.0
  %184 = vmatprep.subr.mxu0 0.0
  %185 = vmatpush2.msra.mxu0 0.0
  %186 = vmatprep.subr.mxu0 0.0
  %187 = vmatpush2.msra.mxu0 0.0
  %188 = vmatprep.mubr.f32.mxu0 0.0
  %189 = vmatmul.mubr.f32.gmra.mxu0 %v122
  %v190 = vpop.f32.mrf.mxu0
  %v191 = vadd.f32 0.0, %v190
  %v192 = vpop.f32.mrf.mxu0
  %193 = vdwg.mxu0
  %v194 = vadd.f32 %v112, %v191
  %v195 = vxor.u32 %v194, 2147483648
  %v196 = vmul.f32 %v195, 1.442695
  %v197 = vpow.pop %v196
  %v198 = vadd.f32 %v197, 1.0
  %v199 = vrcp.pop %v198
  %v200 = vmul.f32 1.0, %v199
  %v201 = vtanh.pop %v194
  %v202 = vmul.f32 %v200, 0.0
  %204 = vrot.lane.b32.xlu0 %v201, 64
  %v205 = vpop.permute.xlu0 %204
  %v207 = vmul.f32 %v200, %v205
  %209 = vrot.lane.b32.xlu0 %v207, 32
  %v210 = vpop.permute.xlu0 %209
  %v212 = vadd.f32 %v202, %v210
  %v213 = vtanh.pop %v212
  %215 = vrot.lane.b32.xlu0 %v213, 64
  %v216 = vpop.permute.xlu0 %215
  %v218 = vmul.f32 %v200, %v216
  %220 = vrot.lane.b32.xlu0 %v218, 32
  %v221 = vpop.permute.xlu0 %220
  %v222 = vsel %vm120, %v221, 0
  %224 = vmatprep.subr.mxu0 0.0
  %225 = vmatpush1.msra.mxu0 0.0
  %226 = vmatprep.subr.mxu0 0.0
  %227 = vmatpush1.msra.mxu0 0.0
  %228 = vmatprep.subr.mxu0 0.0
  %229 = vmatpush1.msra.mxu0 0.0
  %230 = vmatprep.subr.mxu0 0.0
  %231 = vmatpush1.msra.mxu0 0.0
  %232 = vmatprep.subr.mxu0 0.0
  %233 = vmatpush1.msra.mxu0 0.0
  %234 = vmatprep.subr.mxu0 0.0
  %235 = vmatpush1.msra.mxu0 0.0
  %236 = vmatprep.subr.mxu0 0.0
  %237 = vmatpush1.msra.mxu0 0.0
  %238 = vmatprep.subr.mxu0 0.0
  %239 = vmatpush1.msra.mxu0 0.0
  %240 = vmatprep.subr.mxu0 0.0
  %241 = vmatpush1.msra.mxu0 0.0
  %242 = vmatprep.subr.mxu0 0.0
  %243 = vmatpush1.msra.mxu0 0.0
  %244 = vmatprep.subr.mxu0 0.0
  %245 = vmatpush1.msra.mxu0 0.0
  %246 = vmatprep.subr.mxu0 0.0
  %247 = vmatpush1.msra.mxu0 0.0
  %248 = vmatprep.subr.mxu0 0.0
  %249 = vmatpush1.msra.mxu0 %v18
  %250 = vmatprep.subr.mxu0 0.0
  %251 = vmatpush1.msra.mxu0 %v17
  %252 = vmatprep.subr.mxu0 0.0
  %253 = vmatpush1.msra.mxu0 %v16
  %254 = vmatprep.subr.mxu0 0.0
  %255 = vmatpush1.msra.mxu0 %v15
  %256 = vmatprep.subr.mxu0 0.0
  %257 = vmatpush2.msra.mxu0 0.0
  %258 = vmatprep.subr.mxu0 0.0
  %259 = vmatpush2.msra.mxu0 0.0
  %260 = vmatprep.subr.mxu0 0.0
  %261 = vmatpush2.msra.mxu0 0.0
  %262 = vmatprep.subr.mxu0 0.0
  %263 = vmatpush2.msra.mxu0 0.0
  %264 = vmatprep.subr.mxu0 0.0
  %265 = vmatpush2.msra.mxu0 0.0
  %266 = vmatprep.subr.mxu0 0.0
  %267 = vmatpush2.msra.mxu0 0.0
  %268 = vmatprep.subr.mxu0 0.0
  %269 = vmatpush2.msra.mxu0 0.0
  %270 = vmatprep.subr.mxu0 0.0
  %271 = vmatpush2.msra.mxu0 0.0
  %272 = vmatprep.subr.mxu0 0.0
  %273 = vmatpush2.msra.mxu0 0.0
  %274 = vmatprep.subr.mxu0 0.0
  %275 = vmatpush2.msra.mxu0 0.0
  %276 = vmatprep.subr.mxu0 0.0
  %277 = vmatpush2.msra.mxu0 0.0
  %278 = vmatprep.subr.mxu0 0.0
  %279 = vmatpush2.msra.mxu0 0.0
  %280 = vmatprep.subr.mxu0 0.0
  %281 = vmatpush2.msra.mxu0 0.0
  %282 = vmatprep.subr.mxu0 0.0
  %283 = vmatpush2.msra.mxu0 0.0
  %284 = vmatprep.subr.mxu0 0.0
  %285 = vmatpush2.msra.mxu0 0.0
  %286 = vmatprep.subr.mxu0 0.0
  %287 = vmatpush2.msra.mxu0 0.0
  %288 = vmatprep.mubr.f32.mxu0 0.0
  %289 = vmatmul.mubr.f32.gmra.mxu0 %v222
  %v290 = vpop.f32.mrf.mxu0
  %v291 = vadd.f32 0.0, %v290
  %v292 = vpop.f32.mrf.mxu0
  %293 = vdwg.mxu0
  %v295 = vrot.slane %v291, 6
  %v297 = vadd.f32 %v112, %v295
  %v298 = vxor.u32 %v297, 2147483648
  %v299 = vmul.f32 %v298, 1.442695
  %v300 = vpow.pop %v299
  %v301 = vadd.f32 %v300, 1.0
  %v302 = vrcp.pop %v301
  %v303 = vmul.f32 1.0, %v302
  %v304 = vtanh.pop %v297
  %v306 = vrot.slane %v212, 6
  %v308 = vmul.f32 %v303, %v306
  %310 = vrot.lane.b32.xlu0 %v304, 64
  %v311 = vpop.permute.xlu0 %310
  %v313 = vmul.f32 %v303, %v311
  %315 = vrot.lane.b32.xlu0 %v313, 32
  %v316 = vpop.permute.xlu0 %315
  %v318 = vadd.f32 %v308, %v316
  %v319 = vtanh.pop %v318
  %321 = vrot.lane.b32.xlu0 %v319, 64
  %v322 = vpop.permute.xlu0 %321
  %v324 = vmul.f32 %v303, %v322
  %v326 = vrot.slane %v324, 2
  %327 = vrot.lane.b32.xlu0 %v326, 32
  %v328 = vpop.permute.xlu0 %327
  %v329 = vsel %vm120, %v328, 0
  %331 = vmatprep.subr.mxu0 0.0
  %332 = vmatpush1.msra.mxu0 0.0
  %333 = vmatprep.subr.mxu0 0.0
  %334 = vmatpush1.msra.mxu0 0.0
  %335 = vmatprep.subr.mxu0 0.0
  %336 = vmatpush1.msra.mxu0 0.0
  %337 = vmatprep.subr.mxu0 0.0
  %338 = vmatpush1.msra.mxu0 0.0
  %339 = vmatprep.subr.mxu0 0.0
  %340 = vmatpush1.msra.mxu0 0.0
  %341 = vmatprep.subr.mxu0 0.0
  %342 = vmatpush1.msra.mxu0 0.0
  %343 = vmatprep.subr.mxu0 0.0
  %344 = vmatpush1.msra.mxu0 0.0
  %345 = vmatprep.subr.mxu0 0.0
  %346 = vmatpush1.msra.mxu0 0.0
  %347 = vmatprep.subr.mxu0 0.0
  %348 = vmatpush1.msra.mxu0 0.0
  %349 = vmatprep.subr.mxu0 0.0
  %350 = vmatpush1.msra.mxu0 0.0
  %351 = vmatprep.subr.mxu0 0.0
  %352 = vmatpush1.msra.mxu0 0.0
  %353 = vmatprep.subr.mxu0 0.0
  %354 = vmatpush1.msra.mxu0 0.0
  %355 = vmatprep.subr.mxu0 0.0
  %356 = vmatpush1.msra.mxu0 %v18
  %357 = vmatprep.subr.mxu0 0.0
  %358 = vmatpush1.msra.mxu0 %v17
  %359 = vmatprep.subr.mxu0 0.0
  %360 = vmatpush1.msra.mxu0 %v16
  %361 = vmatprep.subr.mxu0 0.0
  %362 = vmatpush1.msra.mxu0 %v15
  %363 = vmatprep.subr.mxu0 0.0
  %364 = vmatpush2.msra.mxu0 0.0
  %365 = vmatprep.subr.mxu0 0.0
  %366 = vmatpush2.msra.mxu0 0.0
  %367 = vmatprep.subr.mxu0 0.0
  %368 = vmatpush2.msra.mxu0 0.0
  %369 = vmatprep.subr.mxu0 0.0
  %370 = vmatpush2.msra.mxu0 0.0
  %371 = vmatprep.subr.mxu0 0.0
  %372 = vmatpush2.msra.mxu0 0.0
  %373 = vmatprep.subr.mxu0 0.0
  %374 = vmatpush2.msra.mxu0 0.0
  %375 = vmatprep.subr.mxu0 0.0
  %376 = vmatpush2.msra.mxu0 0.0
  %377 = vmatprep.subr.mxu0 0.0
  %378 = vmatpush2.msra.mxu0 0.0
  %379 = vmatprep.subr.mxu0 0.0
  %380 = vmatpush2.msra.mxu0 0.0
  %381 = vmatprep.subr.mxu0 0.0
  %382 = vmatpush2.msra.mxu0 0.0
  %383 = vmatprep.subr.mxu0 0.0
  %384 = vmatpush2.msra.mxu0 0.0
  %385 = vmatprep.subr.mxu0 0.0
  %386 = vmatpush2.msra.mxu0 0.0
  %387 = vmatprep.subr.mxu0 0.0
  %388 = vmatpush2.msra.mxu0 0.0
  %389 = vmatprep.subr.mxu0 0.0
  %390 = vmatpush2.msra.mxu0 0.0
  %391 = vmatprep.subr.mxu0 0.0
  %392 = vmatpush2.msra.mxu0 0.0
  %393 = vmatprep.subr.mxu0 0.0
  %394 = vmatpush2.msra.mxu0 0.0
  %395 = vmatprep.mubr.f32.mxu0 0.0
  %396 = vmatmul.mubr.f32.gmra.mxu0 %v329
  %v397 = vpop.f32.mrf.mxu0
  %v398 = vadd.f32 0.0, %v397
  %v399 = vpop.f32.mrf.mxu0
  %400 = vdwg.mxu0
  %v402 = vrot.slane %v398, 4
  %v404 = vadd.f32 %v112, %v402
  %v405 = vxor.u32 %v404, 2147483648
  %v406 = vmul.f32 %v405, 1.442695
  %v407 = vpow.pop %v406
  %v408 = vadd.f32 %v407, 1.0
  %v409 = vrcp.pop %v408
  %v410 = vmul.f32 1.0, %v409
  %v411 = vtanh.pop %v404
  %v413 = vrot.slane %v318, 6
  %v415 = vmul.f32 %v410, %v413
  %417 = vrot.lane.b32.xlu0 %v411, 64
  %v418 = vpop.permute.xlu0 %417
  %v420 = vmul.f32 %v410, %v418
  %422 = vrot.lane.b32.xlu0 %v420, 32
  %v423 = vpop.permute.xlu0 %422
  %v425 = vadd.f32 %v415, %v423
  %v426 = vtanh.pop %v425
  %428 = vrot.lane.b32.xlu0 %v426, 64
  %v429 = vpop.permute.xlu0 %428
  %v431 = vmul.f32 %v410, %v429
  %v433 = vrot.slane %v431, 4
  %434 = vrot.lane.b32.xlu0 %v433, 32
  %v435 = vpop.permute.xlu0 %434
  %v436 = vsel %vm120, %v435, 0
  %438 = vmatprep.subr.mxu0 0.0
  %439 = vmatpush1.msra.mxu0 0.0
  %440 = vmatprep.subr.mxu0 0.0
  %441 = vmatpush1.msra.mxu0 0.0
  %442 = vmatprep.subr.mxu0 0.0
  %443 = vmatpush1.msra.mxu0 0.0
  %444 = vmatprep.subr.mxu0 0.0
  %445 = vmatpush1.msra.mxu0 0.0
  %446 = vmatprep.subr.mxu0 0.0
  %447 = vmatpush1.msra.mxu0 0.0
  %448 = vmatprep.subr.mxu0 0.0
  %449 = vmatpush1.msra.mxu0 0.0
  %450 = vmatprep.subr.mxu0 0.0
  %451 = vmatpush1.msra.mxu0 0.0
  %452 = vmatprep.subr.mxu0 0.0
  %453 = vmatpush1.msra.mxu0 0.0
  %454 = vmatprep.subr.mxu0 0.0
  %455 = vmatpush1.msra.mxu0 0.0
  %456 = vmatprep.subr.mxu0 0.0
  %457 = vmatpush1.msra.mxu0 0.0
  %458 = vmatprep.subr.mxu0 0.0
  %459 = vmatpush1.msra.mxu0 0.0
  %460 = vmatprep.subr.mxu0 0.0
  %461 = vmatpush1.msra.mxu0 0.0
  %462 = vmatprep.subr.mxu0 0.0
  %463 = vmatpush1.msra.mxu0 %v18
  %464 = vmatprep.subr.mxu0 0.0
  %465 = vmatpush1.msra.mxu0 %v17
  %466 = vmatprep.subr.mxu0 0.0
  %467 = vmatpush1.msra.mxu0 %v16
  %468 = vmatprep.subr.mxu0 0.0
  %469 = vmatpush1.msra.mxu0 %v15
  %470 = vmatprep.subr.mxu0 0.0
  %471 = vmatpush2.msra.mxu0 0.0
  %472 = vmatprep.subr.mxu0 0.0
  %473 = vmatpush2.msra.mxu0 0.0
  %474 = vmatprep.subr.mxu0 0.0
  %475 = vmatpush2.msra.mxu0 0.0
  %476 = vmatprep.subr.mxu0 0.0
  %477 = vmatpush2.msra.mxu0 0.0
  %478 = vmatprep.subr.mxu0 0.0
  %479 = vmatpush2.msra.mxu0 0.0
  %480 = vmatprep.subr.mxu0 0.0
  %481 = vmatpush2.msra.mxu0 0.0
  %482 = vmatprep.subr.mxu0 0.0
  %483 = vmatpush2.msra.mxu0 0.0
  %484 = vmatprep.subr.mxu0 0.0
  %485 = vmatpush2.msra.mxu0 0.0
  %486 = vmatprep.subr.mxu0 0.0
  %487 = vmatpush2.msra.mxu0 0.0
  %488 = vmatprep.subr.mxu0 0.0
  %489 = vmatpush2.msra.mxu0 0.0
  %490 = vmatprep.subr.mxu0 0.0
  %491 = vmatpush2.msra.mxu0 0.0
  %492 = vmatprep.subr.mxu0 0.0
  %493 = vmatpush2.msra.mxu0 0.0
  %494 = vmatprep.subr.mxu0 0.0
  %495 = vmatpush2.msra.mxu0 0.0
  %496 = vmatprep.subr.mxu0 0.0
  %497 = vmatpush2.msra.mxu0 0.0
  %498 = vmatprep.subr.mxu0 0.0
  %499 = vmatpush2.msra.mxu0 0.0
  %500 = vmatprep.subr.mxu0 0.0
  %501 = vmatpush2.msra.mxu0 0.0
  %502 = vmatprep.mubr.f32.mxu0 0.0
  %503 = vmatmul.mubr.f32.gmra.mxu0 %v436
  %v504 = vpop.f32.mrf.mxu0
  %v505 = vadd.f32 0.0, %v504
  %v506 = vpop.f32.mrf.mxu0
  %507 = vdwg.mxu0
  %v509 = vrot.slane %v505, 2
  %v511 = vadd.f32 %v112, %v509
  %v512 = vxor.u32 %v511, 2147483648
  %v513 = vmul.f32 %v512, 1.442695
  %v514 = vpow.pop %v513
  %v515 = vadd.f32 %v514, 1.0
  %v516 = vrcp.pop %v515
  %v517 = vmul.f32 1.0, %v516
  %v518 = vtanh.pop %v511
  %v520 = vrot.slane %v425, 6
  %v522 = vmul.f32 %v517, %v520
  %524 = vrot.lane.b32.xlu0 %v518, 64
  %v525 = vpop.permute.xlu0 %524
  %v527 = vmul.f32 %v517, %v525
  %529 = vrot.lane.b32.xlu0 %v527, 32
  %v530 = vpop.permute.xlu0 %529
  %v532 = vadd.f32 %v522, %v530
  %v533 = vtanh.pop %v532
  %535 = vrot.lane.b32.xlu0 %v533, 64
  %v536 = vpop.permute.xlu0 %535
  %v538 = vmul.f32 %v517, %v536
  %v540 = vrot.slane %v538, 6
  %541 = vrot.lane.b32.xlu0 %v540, 32
  %v542 = vpop.permute.xlu0 %541
  %v543 = vsel %vm120, %v542, 0
  %545 = vmatprep.subr.mxu0 0.0
  %546 = vmatpush1.msra.mxu0 0.0
  %547 = vmatprep.subr.mxu0 0.0
  %548 = vmatpush1.msra.mxu0 0.0
  %549 = vmatprep.subr.mxu0 0.0
  %550 = vmatpush1.msra.mxu0 0.0
  %551 = vmatprep.subr.mxu0 0.0
  %552 = vmatpush1.msra.mxu0 0.0
  %553 = vmatprep.subr.mxu0 0.0
  %554 = vmatpush1.msra.mxu0 0.0
  %555 = vmatprep.subr.mxu0 0.0
  %556 = vmatpush1.msra.mxu0 0.0
  %557 = vmatprep.subr.mxu0 0.0
  %558 = vmatpush1.msra.mxu0 0.0
  %559 = vmatprep.subr.mxu0 0.0
  %560 = vmatpush1.msra.mxu0 0.0
  %561 = vmatprep.subr.mxu0 0.0
  %562 = vmatpush1.msra.mxu0 0.0
  %563 = vmatprep.subr.mxu0 0.0
  %564 = vmatpush1.msra.mxu0 0.0
  %565 = vmatprep.subr.mxu0 0.0
  %566 = vmatpush1.msra.mxu0 0.0
  %567 = vmatprep.subr.mxu0 0.0
  %568 = vmatpush1.msra.mxu0 0.0
  %569 = vmatprep.subr.mxu0 0.0
  %570 = vmatpush1.msra.mxu0 %v18
  %571 = vmatprep.subr.mxu0 0.0
  %572 = vmatpush1.msra.mxu0 %v17
  %573 = vmatprep.subr.mxu0 0.0
  %574 = vmatpush1.msra.mxu0 %v16
  %575 = vmatprep.subr.mxu0 0.0
  %576 = vmatpush1.msra.mxu0 %v15
  %577 = vmatprep.subr.mxu0 0.0
  %578 = vmatpush2.msra.mxu0 0.0
  %579 = vmatprep.subr.mxu0 0.0
  %580 = vmatpush2.msra.mxu0 0.0
  %581 = vmatprep.subr.mxu0 0.0
  %582 = vmatpush2.msra.mxu0 0.0
  %583 = vmatprep.subr.mxu0 0.0
  %584 = vmatpush2.msra.mxu0 0.0
  %585 = vmatprep.subr.mxu0 0.0
  %586 = vmatpush2.msra.mxu0 0.0
  %587 = vmatprep.subr.mxu0 0.0
  %588 = vmatpush2.msra.mxu0 0.0
  %589 = vmatprep.subr.mxu0 0.0
  %590 = vmatpush2.msra.mxu0 0.0
  %591 = vmatprep.subr.mxu0 0.0
  %592 = vmatpush2.msra.mxu0 0.0
  %593 = vmatprep.subr.mxu0 0.0
  %594 = vmatpush2.msra.mxu0 0.0
  %595 = vmatprep.subr.mxu0 0.0
  %596 = vmatpush2.msra.mxu0 0.0
  %597 = vmatprep.subr.mxu0 0.0
  %598 = vmatpush2.msra.mxu0 0.0
  %599 = vmatprep.subr.mxu0 0.0
  %600 = vmatpush2.msra.mxu0 0.0
  %601 = vmatprep.subr.mxu0 0.0
  %602 = vmatpush2.msra.mxu0 0.0
  %603 = vmatprep.subr.mxu0 0.0
  %604 = vmatpush2.msra.mxu0 0.0
  %605 = vmatprep.subr.mxu0 0.0
  %606 = vmatpush2.msra.mxu0 0.0
  %607 = vmatprep.subr.mxu0 0.0
  %608 = vmatpush2.msra.mxu0 0.0
  %609 = vmatprep.mubr.f32.mxu0 0.0
  %610 = vmatmul.mubr.f32.gmra.mxu0 %v543
  %v611 = vpop.f32.mrf.mxu0
  %v612 = vadd.f32 0.0, %v611
  %v613 = vpop.f32.mrf.mxu0
  %614 = vdwg.mxu0
  %v615 = vadd.f32 %v117, %v612
  %v616 = vxor.u32 %v615, 2147483648
  %v617 = vmul.f32 %v616, 1.442695
  %v618 = vpow.pop %v617
  %v619 = vadd.f32 %v618, 1.0
  %v620 = vrcp.pop %v619
  %v621 = vmul.f32 1.0, %v620
  %v622 = vtanh.pop %v615
  %v624 = vrot.slane %v532, 6
  %v626 = vmul.f32 %v621, %v624
  %628 = vrot.lane.b32.xlu0 %v622, 64
  %v629 = vpop.permute.xlu0 %628
  %v631 = vmul.f32 %v621, %v629
  %633 = vrot.lane.b32.xlu0 %v631, 32
  %v634 = vpop.permute.xlu0 %633
  %v636 = vadd.f32 %v626, %v634
  %v637 = vtanh.pop %v636
  %639 = vrot.lane.b32.xlu0 %v637, 64
  %v640 = vpop.permute.xlu0 %639
  %v642 = vmul.f32 %v621, %v640
  %644 = vrot.lane.b32.xlu0 %v642, 32
  %v645 = vpop.permute.xlu0 %644
  %v646 = vsel %vm120, %v645, 0
  %648 = vmatprep.subr.mxu0 0.0
  %649 = vmatpush1.msra.mxu0 0.0
  %650 = vmatprep.subr.mxu0 0.0
  %651 = vmatpush1.msra.mxu0 0.0
  %652 = vmatprep.subr.mxu0 0.0
  %653 = vmatpush1.msra.mxu0 0.0
  %654 = vmatprep.subr.mxu0 0.0
  %655 = vmatpush1.msra.mxu0 0.0
  %656 = vmatprep.subr.mxu0 0.0
  %657 = vmatpush1.msra.mxu0 0.0
  %658 = vmatprep.subr.mxu0 0.0
  %659 = vmatpush1.msra.mxu0 0.0
  %660 = vmatprep.subr.mxu0 0.0
  %661 = vmatpush1.msra.mxu0 0.0
  %662 = vmatprep.subr.mxu0 0.0
  %663 = vmatpush1.msra.mxu0 0.0
  %664 = vmatprep.subr.mxu0 0.0
  %665 = vmatpush1.msra.mxu0 0.0
  %666 = vmatprep.subr.mxu0 0.0
  %667 = vmatpush1.msra.mxu0 0.0
  %668 = vmatprep.subr.mxu0 0.0
  %669 = vmatpush1.msra.mxu0 0.0
  %670 = vmatprep.subr.mxu0 0.0
  %671 = vmatpush1.msra.mxu0 0.0
  %672 = vmatprep.subr.mxu0 0.0
  %673 = vmatpush1.msra.mxu0 %v18
  %674 = vmatprep.subr.mxu0 0.0
  %675 = vmatpush1.msra.mxu0 %v17
  %676 = vmatprep.subr.mxu0 0.0
  %677 = vmatpush1.msra.mxu0 %v16
  %678 = vmatprep.subr.mxu0 0.0
  %679 = vmatpush1.msra.mxu0 %v15
  %680 = vmatprep.subr.mxu0 0.0
  %681 = vmatpush2.msra.mxu0 0.0
  %682 = vmatprep.subr.mxu0 0.0
  %683 = vmatpush2.msra.mxu0 0.0
  %684 = vmatprep.subr.mxu0 0.0
  %685 = vmatpush2.msra.mxu0 0.0
  %686 = vmatprep.subr.mxu0 0.0
  %687 = vmatpush2.msra.mxu0 0.0
  %688 = vmatprep.subr.mxu0 0.0
  %689 = vmatpush2.msra.mxu0 0.0
  %690 = vmatprep.subr.mxu0 0.0
  %691 = vmatpush2.msra.mxu0 0.0
  %692 = vmatprep.subr.mxu0 0.0
  %693 = vmatpush2.msra.mxu0 0.0
  %694 = vmatprep.subr.mxu0 0.0
  %695 = vmatpush2.msra.mxu0 0.0
  %696 = vmatprep.subr.mxu0 0.0
  %697 = vmatpush2.msra.mxu0 0.0
  %698 = vmatprep.subr.mxu0 0.0
  %699 = vmatpush2.msra.mxu0 0.0
  %700 = vmatprep.subr.mxu0 0.0
  %701 = vmatpush2.msra.mxu0 0.0
  %702 = vmatprep.subr.mxu0 0.0
  %703 = vmatpush2.msra.mxu0 0.0
  %704 = vmatprep.subr.mxu0 0.0
  %705 = vmatpush2.msra.mxu0 0.0
  %706 = vmatprep.subr.mxu0 0.0
  %707 = vmatpush2.msra.mxu0 0.0
  %708 = vmatprep.subr.mxu0 0.0
  %709 = vmatpush2.msra.mxu0 0.0
  %710 = vmatprep.subr.mxu0 0.0
  %711 = vmatpush2.msra.mxu0 0.0
  %712 = vmatprep.mubr.f32.mxu0 0.0
  %713 = vmatmul.mubr.f32.gmra.mxu0 %v646
  %v714 = vpop.f32.mrf.mxu0
  %v715 = vadd.f32 0.0, %v714
  %v716 = vpop.f32.mrf.mxu0
  %717 = vdwg.mxu0
  %v719 = vrot.slane %v715, 6
  %v721 = vadd.f32 %v117, %v719
  %v722 = vxor.u32 %v721, 2147483648
  %v723 = vmul.f32 %v722, 1.442695
  %v724 = vpow.pop %v723
  %v725 = vadd.f32 %v724, 1.0
  %v726 = vrcp.pop %v725
  %v727 = vmul.f32 1.0, %v726
  %v728 = vtanh.pop %v721
  %v730 = vrot.slane %v636, 6
  %v732 = vmul.f32 %v727, %v730
  %734 = vrot.lane.b32.xlu0 %v728, 64
  %v735 = vpop.permute.xlu0 %734
  %v737 = vmul.f32 %v727, %v735
  %739 = vrot.lane.b32.xlu0 %v737, 32
  %v740 = vpop.permute.xlu0 %739
  %v742 = vadd.f32 %v732, %v740
  %v743 = vtanh.pop %v742
  %745 = vrot.lane.b32.xlu0 %v743, 64
  %v746 = vpop.permute.xlu0 %745
  %v748 = vmul.f32 %v727, %v746
  %v750 = vrot.slane %v748, 2
  %751 = vrot.lane.b32.xlu0 %v750, 32
  %v752 = vpop.permute.xlu0 %751
  %v753 = vsel %vm120, %v752, 0
  %755 = vmatprep.subr.mxu0 0.0
  %756 = vmatpush1.msra.mxu0 0.0
  %757 = vmatprep.subr.mxu0 0.0
  %758 = vmatpush1.msra.mxu0 0.0
  %759 = vmatprep.subr.mxu0 0.0
  %760 = vmatpush1.msra.mxu0 0.0
  %761 = vmatprep.subr.mxu0 0.0
  %762 = vmatpush1.msra.mxu0 0.0
  %763 = vmatprep.subr.mxu0 0.0
  %764 = vmatpush1.msra.mxu0 0.0
  %765 = vmatprep.subr.mxu0 0.0
  %766 = vmatpush1.msra.mxu0 0.0
  %767 = vmatprep.subr.mxu0 0.0
  %768 = vmatpush1.msra.mxu0 0.0
  %769 = vmatprep.subr.mxu0 0.0
  %770 = vmatpush1.msra.mxu0 0.0
  %771 = vmatprep.subr.mxu0 0.0
  %772 = vmatpush1.msra.mxu0 0.0
  %773 = vmatprep.subr.mxu0 0.0
  %774 = vmatpush1.msra.mxu0 0.0
  %775 = vmatprep.subr.mxu0 0.0
  %776 = vmatpush1.msra.mxu0 0.0
  %777 = vmatprep.subr.mxu0 0.0
  %778 = vmatpush1.msra.mxu0 0.0
  %779 = vmatprep.subr.mxu0 0.0
  %780 = vmatpush1.msra.mxu0 %v18
  %781 = vmatprep.subr.mxu0 0.0
  %782 = vmatpush1.msra.mxu0 %v17
  %783 = vmatprep.subr.mxu0 0.0
  %784 = vmatpush1.msra.mxu0 %v16
  %785 = vmatprep.subr.mxu0 0.0
  %786 = vmatpush1.msra.mxu0 %v15
  %787 = vmatprep.subr.mxu0 0.0
  %788 = vmatpush2.msra.mxu0 0.0
  %789 = vmatprep.subr.mxu0 0.0
  %790 = vmatpush2.msra.mxu0 0.0
  %791 = vmatprep.subr.mxu0 0.0
  %792 = vmatpush2.msra.mxu0 0.0
  %793 = vmatprep.subr.mxu0 0.0
  %794 = vmatpush2.msra.mxu0 0.0
  %795 = vmatprep.subr.mxu0 0.0
  %796 = vmatpush2.msra.mxu0 0.0
  %797 = vmatprep.subr.mxu0 0.0
  %798 = vmatpush2.msra.mxu0 0.0
  %799 = vmatprep.subr.mxu0 0.0
  %800 = vmatpush2.msra.mxu0 0.0
  %801 = vmatprep.subr.mxu0 0.0
  %802 = vmatpush2.msra.mxu0 0.0
  %803 = vmatprep.subr.mxu0 0.0
  %804 = vmatpush2.msra.mxu0 0.0
  %805 = vmatprep.subr.mxu0 0.0
  %806 = vmatpush2.msra.mxu0 0.0
  %807 = vmatprep.subr.mxu0 0.0
  %808 = vmatpush2.msra.mxu0 0.0
  %809 = vmatprep.subr.mxu0 0.0
  %810 = vmatpush2.msra.mxu0 0.0
  %811 = vmatprep.subr.mxu0 0.0
  %812 = vmatpush2.msra.mxu0 0.0
  %813 = vmatprep.subr.mxu0 0.0
  %814 = vmatpush2.msra.mxu0 0.0
  %815 = vmatprep.subr.mxu0 0.0
  %816 = vmatpush2.msra.mxu0 0.0
  %817 = vmatprep.subr.mxu0 0.0
  %818 = vmatpush2.msra.mxu0 0.0
  %819 = vmatprep.mubr.f32.mxu0 0.0
  %820 = vmatmul.mubr.f32.gmra.mxu0 %v753
  %v821 = vpop.f32.mrf.mxu0
  %v822 = vadd.f32 0.0, %v821
  %v823 = vpop.f32.mrf.mxu0
  %824 = vdwg.mxu0
  %v826 = vrot.slane %v822, 4
  %v828 = vadd.f32 %v117, %v826
  %v829 = vxor.u32 %v828, 2147483648
  %v830 = vmul.f32 %v829, 1.442695
  %v831 = vpow.pop %v830
  %v832 = vadd.f32 %v831, 1.0
  %v833 = vrcp.pop %v832
  %v834 = vmul.f32 1.0, %v833
  %v835 = vtanh.pop %v828
  %v837 = vrot.slane %v742, 6
  %v839 = vmul.f32 %v834, %v837
  %841 = vrot.lane.b32.xlu0 %v835, 64
  %v842 = vpop.permute.xlu0 %841
  %v844 = vmul.f32 %v834, %v842
  %846 = vrot.lane.b32.xlu0 %v844, 32
  %v847 = vpop.permute.xlu0 %846
  %v849 = vadd.f32 %v839, %v847
  %v850 = vtanh.pop %v849
  %852 = vrot.lane.b32.xlu0 %v850, 64
  %v853 = vpop.permute.xlu0 %852
  %v855 = vmul.f32 %v834, %v853
  %v857 = vrot.slane %v855, 4
  %858 = vrot.lane.b32.xlu0 %v857, 32
  %v859 = vpop.permute.xlu0 %858
  %v860 = vsel %vm120, %v859, 0
  %862 = vmatprep.subr.mxu0 0.0
  %863 = vmatpush1.msra.mxu0 0.0
  %864 = vmatprep.subr.mxu0 0.0
  %865 = vmatpush1.msra.mxu0 0.0
  %866 = vmatprep.subr.mxu0 0.0
  %867 = vmatpush1.msra.mxu0 0.0
  %868 = vmatprep.subr.mxu0 0.0
  %869 = vmatpush1.msra.mxu0 0.0
  %870 = vmatprep.subr.mxu0 0.0
  %871 = vmatpush1.msra.mxu0 0.0
  %872 = vmatprep.subr.mxu0 0.0
  %873 = vmatpush1.msra.mxu0 0.0
  %874 = vmatprep.subr.mxu0 0.0
  %875 = vmatpush1.msra.mxu0 0.0
  %876 = vmatprep.subr.mxu0 0.0
  %877 = vmatpush1.msra.mxu0 0.0
  %878 = vmatprep.subr.mxu0 0.0
  %879 = vmatpush1.msra.mxu0 0.0
  %880 = vmatprep.subr.mxu0 0.0
  %881 = vmatpush1.msra.mxu0 0.0
  %882 = vmatprep.subr.mxu0 0.0
  %883 = vmatpush1.msra.mxu0 0.0
  %884 = vmatprep.subr.mxu0 0.0
  %885 = vmatpush1.msra.mxu0 0.0
  %886 = vmatprep.subr.mxu0 0.0
  %887 = vmatpush1.msra.mxu0 %v18
  %888 = vmatprep.subr.mxu0 0.0
  %889 = vmatpush1.msra.mxu0 %v17
  %890 = vmatprep.subr.mxu0 0.0
  %891 = vmatpush1.msra.mxu0 %v16
  %892 = vmatprep.subr.mxu0 0.0
  %893 = vmatpush1.msra.mxu0 %v15
  %894 = vmatprep.subr.mxu0 0.0
  %895 = vmatpush2.msra.mxu0 0.0
  %896 = vmatprep.subr.mxu0 0.0
  %897 = vmatpush2.msra.mxu0 0.0
  %898 = vmatprep.subr.mxu0 0.0
  %899 = vmatpush2.msra.mxu0 0.0
  %900 = vmatprep.subr.mxu0 0.0
  %901 = vmatpush2.msra.mxu0 0.0
  %902 = vmatprep.subr.mxu0 0.0
  %903 = vmatpush2.msra.mxu0 0.0
  %904 = vmatprep.subr.mxu0 0.0
  %905 = vmatpush2.msra.mxu0 0.0
  %906 = vmatprep.subr.mxu0 0.0
  %907 = vmatpush2.msra.mxu0 0.0
  %908 = vmatprep.subr.mxu0 0.0
  %909 = vmatpush2.msra.mxu0 0.0
  %910 = vmatprep.subr.mxu0 0.0
  %911 = vmatpush2.msra.mxu0 0.0
  %912 = vmatprep.subr.mxu0 0.0
  %913 = vmatpush2.msra.mxu0 0.0
  %914 = vmatprep.subr.mxu0 0.0
  %915 = vmatpush2.msra.mxu0 0.0
  %916 = vmatprep.subr.mxu0 0.0
  %917 = vmatpush2.msra.mxu0 0.0
  %918 = vmatprep.subr.mxu0 0.0
  %919 = vmatpush2.msra.mxu0 0.0
  %920 = vmatprep.subr.mxu0 0.0
  %921 = vmatpush2.msra.mxu0 0.0
  %922 = vmatprep.subr.mxu0 0.0
  %923 = vmatpush2.msra.mxu0 0.0
  %924 = vmatprep.subr.mxu0 0.0
  %925 = vmatpush2.msra.mxu0 0.0
  %926 = vmatprep.mubr.f32.mxu0 0.0
  %927 = vmatmul.mubr.f32.gmra.mxu0 %v860
  %v928 = vpop.f32.mrf.mxu0
  %v929 = vadd.f32 0.0, %v928
  %v930 = vpop.f32.mrf.mxu0
  %931 = vdwg.mxu0
  %v933 = vrot.slane %v929, 2
  %v935 = vadd.f32 %v117, %v933
  %v936 = vxor.u32 %v935, 2147483648
  %v937 = vmul.f32 %v936, 1.442695
  %v938 = vpow.pop %v937
  %v939 = vadd.f32 %v938, 1.0
  %v940 = vrcp.pop %v939
  %v941 = vmul.f32 1.0, %v940
  %v942 = vtanh.pop %v935
  %v944 = vrot.slane %v849, 6
  %v946 = vmul.f32 %v941, %v944
  %948 = vrot.lane.b32.xlu0 %v942, 64
  %v949 = vpop.permute.xlu0 %948
  %v951 = vmul.f32 %v941, %v949
  %953 = vrot.lane.b32.xlu0 %v951, 32
  %v954 = vpop.permute.xlu0 %953
  %v956 = vadd.f32 %v946, %v954
  %v957 = vtanh.pop %v956
  %959 = vrot.lane.b32.xlu0 %v957, 64
  %v960 = vpop.permute.xlu0 %959
  %v962 = vmul.f32 %v941, %v960
  %v963 = vld [vmem:[%s1] sm:$0x3]
  %v964 = vlaneseq
  %v965 = vshrl.u32 %v964, 7
  %v966 = vsub.s32 0, %v965
  %v967 = vrot.slane %v20, %v966
  %vm968 = vcmask 31744
  %v970 = vsel %vm968, %v963, 0
  %vm972 = vcmask 1043456
  %v974 = vsel %vm972, %v23, 0
  %976 = vmatprep.subr.mxu0 0.0
  %977 = vmatpush1.msra.mxu0 0.0
  %978 = vmatprep.subr.mxu0 0.0
  %979 = vmatpush1.msra.mxu0 0.0
  %980 = vmatprep.subr.mxu0 0.0
  %981 = vmatpush1.msra.mxu0 0.0
  %982 = vmatprep.subr.mxu0 0.0
  %983 = vmatpush1.msra.mxu0 0.0
  %984 = vmatprep.subr.mxu0 0.0
  %985 = vmatpush1.msra.mxu0 0.0
  %986 = vmatprep.subr.mxu0 0.0
  %987 = vmatpush1.msra.mxu0 0.0
  %988 = vmatprep.subr.mxu0 0.0
  %989 = vmatpush1.msra.mxu0 0.0
  %990 = vmatprep.subr.mxu0 0.0
  %991 = vmatpush1.msra.mxu0 0.0
  %992 = vmatprep.subr.mxu0 0.0
  %993 = vmatpush1.msra.mxu0 0.0
  %994 = vmatprep.subr.mxu0 0.0
  %995 = vmatpush1.msra.mxu0 0.0
  %996 = vmatprep.subr.mxu0 0.0
  %997 = vmatpush1.msra.mxu0 0.0
  %998 = vmatprep.subr.mxu0 0.0
  %999 = vmatpush1.msra.mxu0 0.0
  %1000 = vmatprep.subr.mxu0 0.0
  %1001 = vmatpush1.msra.mxu0 0.0
  %1002 = vmatprep.subr.mxu0 0.0
  %1003 = vmatpush1.msra.mxu0 0.0
  %1004 = vmatprep.subr.mxu0 0.0
  %1005 = vmatpush1.msra.mxu0 0.0
  %1006 = vmatprep.subr.mxu0 0.0
  %1007 = vmatpush1.msra.mxu0 %v974
  %1008 = vmatprep.subr.mxu0 0.0
  %1009 = vmatpush2.msra.mxu0 0.0
  %1010 = vmatprep.subr.mxu0 0.0
  %1011 = vmatpush2.msra.mxu0 0.0
  %1012 = vmatprep.subr.mxu0 0.0
  %1013 = vmatpush2.msra.mxu0 0.0
  %1014 = vmatprep.subr.mxu0 0.0
  %1015 = vmatpush2.msra.mxu0 0.0
  %1016 = vmatprep.subr.mxu0 0.0
  %1017 = vmatpush2.msra.mxu0 0.0
  %1018 = vmatprep.subr.mxu0 0.0
  %1019 = vmatpush2.msra.mxu0 0.0
  %1020 = vmatprep.subr.mxu0 0.0
  %1021 = vmatpush2.msra.mxu0 0.0
  %1022 = vmatprep.subr.mxu0 0.0
  %1023 = vmatpush2.msra.mxu0 0.0
  %1024 = vmatprep.subr.mxu0 0.0
  %1025 = vmatpush2.msra.mxu0 0.0
  %1026 = vmatprep.subr.mxu0 0.0
  %1027 = vmatpush2.msra.mxu0 0.0
  %1028 = vmatprep.subr.mxu0 0.0
  %1029 = vmatpush2.msra.mxu0 0.0
  %1030 = vmatprep.subr.mxu0 0.0
  %1031 = vmatpush2.msra.mxu0 0.0
  %1032 = vmatprep.subr.mxu0 0.0
  %1033 = vmatpush2.msra.mxu0 0.0
  %1034 = vmatprep.subr.mxu0 0.0
  %1035 = vmatpush2.msra.mxu0 0.0
  %1036 = vmatprep.subr.mxu0 0.0
  %1037 = vmatpush2.msra.mxu0 0.0
  %1038 = vmatprep.subr.mxu0 0.0
  %1039 = vmatpush2.msra.mxu0 0.0
  %1040 = vmatprep.mubr.f32.mxu0 0.0
  %1041 = vmatmul.mubr.f32.gmra.mxu0 %v970
  %v1042 = vpop.f32.mrf.mxu0
  %v1043 = vadd.f32 %v967, %v1042
  %v1044 = vpop.f32.mrf.mxu0
  %1045 = vdwg.mxu0
  %1047 = vrot.lane.b32.xlu0 %v1043, 96
  %v1048 = vpop.permute.xlu0 %1047
  %vm1049 = vcmask 1041408
  %v1050 = vsel %vm1049, %v218, %v324
  %v1051 = vsel %vm972, %v1050, %v431
  %v1052 = vsel %vm41, %v1051, %v538
  %v1053 = vsel %vm1049, %v642, %v748
  %v1054 = vsel %vm972, %v1053, %v855
  %v1055 = vsel %vm41, %v1054, %v962
  %v1056 = vlaneseq
  %v1057 = vshrl.u32 %v1056, 7
  %v1058 = vsub.s32 0, %v1057
  %v1059 = vrot.slane %v21, %v1058
  %1062 = vrot.lane.b32.xlu0 %v1052, 32
  %v1063 = vpop.permute.xlu0 %1062
  %1064 = vrot.lane.b32.xlu0 %v1055, 32
  %v1065 = vpop.permute.xlu0 %1064
  %1066 = vrot.lane.b32.xlu0 %v1048, 32
  %v1067 = vpop.permute.xlu0 %1066
  %v1068 = vsel %vm120, %v1063, 0
  %v1070 = vsel %vm120, %v1065, 0
  %v1072 = vsel %vm120, %v1067, 0
  %1074 = vmatprep.subr.mxu0 0.0
  %1075 = vmatpush1.msra.mxu0 0.0
  %1076 = vmatprep.subr.mxu0 0.0
  %1077 = vmatpush1.msra.mxu0 0.0
  %1078 = vmatprep.subr.mxu0 0.0
  %1079 = vmatpush1.msra.mxu0 0.0
  %1080 = vmatprep.subr.mxu0 0.0
  %1081 = vmatpush1.msra.mxu0 0.0
  %1082 = vmatprep.subr.mxu0 0.0
  %1083 = vmatpush1.msra.mxu0 0.0
  %1084 = vmatprep.subr.mxu0 0.0
  %1085 = vmatpush1.msra.mxu0 0.0
  %1086 = vmatprep.subr.mxu0 0.0
  %1087 = vmatpush1.msra.mxu0 0.0
  %1088 = vmatprep.subr.mxu0 0.0
  %1089 = vmatpush1.msra.mxu0 0.0
  %1090 = vmatprep.subr.mxu0 0.0
  %1091 = vmatpush1.msra.mxu0 0.0
  %1092 = vmatprep.subr.mxu0 0.0
  %1093 = vmatpush1.msra.mxu0 0.0
  %1094 = vmatprep.subr.mxu0 0.0
  %1095 = vmatpush1.msra.mxu0 0.0
  %1096 = vmatprep.subr.mxu0 0.0
  %1097 = vmatpush1.msra.mxu0 0.0
  %1098 = vmatprep.subr.mxu0 0.0
  %1099 = vmatpush1.msra.mxu0 %v27
  %1100 = vmatprep.subr.mxu0 0.0
  %1101 = vmatpush1.msra.mxu0 %v26
  %1102 = vmatprep.subr.mxu0 0.0
  %1103 = vmatpush1.msra.mxu0 %v25
  %1104 = vmatprep.subr.mxu0 0.0
  %1105 = vmatpush1.msra.mxu0 %v24
  %1106 = vmatprep.subr.mxu0 0.0
  %1107 = vmatpush2.msra.mxu0 0.0
  %1108 = vmatprep.subr.mxu0 0.0
  %1109 = vmatpush2.msra.mxu0 0.0
  %1110 = vmatprep.subr.mxu0 0.0
  %1111 = vmatpush2.msra.mxu0 0.0
  %1112 = vmatprep.subr.mxu0 0.0
  %1113 = vmatpush2.msra.mxu0 0.0
  %1114 = vmatprep.subr.mxu0 0.0
  %1115 = vmatpush2.msra.mxu0 0.0
  %1116 = vmatprep.subr.mxu0 0.0
  %1117 = vmatpush2.msra.mxu0 0.0
  %1118 = vmatprep.subr.mxu0 0.0
  %1119 = vmatpush2.msra.mxu0 0.0
  %1120 = vmatprep.subr.mxu0 0.0
  %1121 = vmatpush2.msra.mxu0 0.0
  %1122 = vmatprep.subr.mxu0 0.0
  %1123 = vmatpush2.msra.mxu0 0.0
  %1124 = vmatprep.subr.mxu0 0.0
  %1125 = vmatpush2.msra.mxu0 0.0
  %1126 = vmatprep.subr.mxu0 0.0
  %1127 = vmatpush2.msra.mxu0 0.0
  %1128 = vmatprep.subr.mxu0 0.0
  %1129 = vmatpush2.msra.mxu0 0.0
  %1130 = vmatprep.subr.mxu0 0.0
  %1131 = vmatpush2.msra.mxu0 0.0
  %1132 = vmatprep.subr.mxu0 0.0
  %1133 = vmatpush2.msra.mxu0 0.0
  %1134 = vmatprep.subr.mxu0 0.0
  %1135 = vmatpush2.msra.mxu0 0.0
  %1136 = vmatprep.subr.mxu0 0.0
  %1137 = vmatpush2.msra.mxu0 0.0
  %1138 = vmatprep.mubr.f32.mxu0 0.0
  %1139 = vmatmul.mubr.f32.gmra.mxu0 %v1068
  %v1140 = vpop.f32.mrf.mxu0
  %v1141 = vadd.f32 %v1059, %v1140
  %v1142 = vpop.f32.mrf.mxu0
  %1143 = vmatprep.mubr.f32.mxu0 0.0
  %1144 = vmatmul.mubr.f32.gmra.mxu0 %v1070
  %v1145 = vpop.f32.mrf.mxu0
  %v1146 = vadd.f32 %v1059, %v1145
  %v1147 = vpop.f32.mrf.mxu0
  %1148 = vmatprep.mubr.f32.mxu0 0.0
  %1149 = vmatmul.mubr.f32.gmra.mxu0 %v1072
  %v1150 = vpop.f32.mrf.mxu0
  %v1151 = vadd.f32 %v1059, %v1150
  %v1152 = vpop.f32.mrf.mxu0
  %1153 = vdwg.mxu0
  %v1154 = vlaneseq
  %v1155 = vshrl.u32 %v1154, 7
  %v1156 = vadd.s32 %v1155, 8
  %v1157 = vadd.s32 %v1155, 16
  %v1158 = vadd.s32 %v1155, 24
  %v1159 = vlaneseq
  %v1160 = vand.u32 %v1159, 127
  %v1161 = vmul.u32 %v1160, 4
  %vm1162 = vcmp.ge.s32.totalorder %v1155, %v1161
  %vm1163 = vcmp.ge.s32.totalorder %v1156, %v1161
  %vm1164 = vcmp.ge.s32.totalorder %v1157, %v1161
  %vm1165 = vcmp.ge.s32.totalorder %v1158, %v1161
  %v1166 = vadd.s32 %v1160, 1
  %v1167 = vmul.u32 %v1166, 4
  %vm1168 = vcmp.lt.s32.totalorder %v1155, %v1167
  %vm1169 = vcmp.lt.s32.totalorder %v1156, %v1167
  %vm1170 = vcmp.lt.s32.totalorder %v1157, %v1167
  %vm1171 = vcmp.lt.s32.totalorder %v1158, %v1167
  %vm1172 = vmand %vm1162, %vm1168
  %vm1173 = vmand %vm1163, %vm1169
  %vm1174 = vmand %vm1164, %vm1170
  %vm1175 = vmand %vm1165, %vm1171
  %v1176 = vsel %vm1172, 0.5, 0.0
  %v1177 = vsel %vm1173, 0.5, 0.0
  %v1178 = vsel %vm1174, 0.5, 0.0
  %v1179 = vsel %vm1175, 0.5, 0.0
  %v1180 = vmul.u32 %v1155, 4
  %vm1181 = vcmp.ge.s32.totalorder %v1160, %v1180
  %v1182 = vadd.s32 %v1155, 1
  %v1183 = vmul.u32 %v1182, 4
  %vm1184 = vcmp.lt.s32.totalorder %v1160, %v1183
  %vm1185 = vmand %vm1181, %vm1184
  %v1186 = vsel %vm1185, 1.0, 0.0
  %v1187 = vand.u32 %v1160, 1
  %vm1188 = vcmp.eq.s32.totalorder %v1187, %v1155
  %v1189 = vsel %vm1188, 1.0, 0.0
  %v1191 = vrot.slane %v1151, 6
  %v1193 = vrot.slane %v1151, 4
  %v1195 = vrot.slane %v1151, 2
  %v1197 = vsel %vm1049, %v1151, %v1191
  %v1198 = vsel %vm972, %v1197, %v1193
  %v1199 = vsel %vm41, %v1198, %v1195
  %1201 = vrot.lane.b32.xlu0 %v1199, 32
  %v1202 = vpop.permute.xlu0 %1201
  %1203 = vrot.lane.b32.xlu0 %v1151, 32
  %v1204 = vpop.permute.xlu0 %1203
  %v1207 = vmul.f32 %v1141, %v1202
  %v1208 = vmul.f32 %v1146, %v1202
  %v1209 = vmul.f32 %v1151, %v1204
  %1213 = vrot.lane.b32.xlu0 %v1207, 96
  %v1214 = vpop.permute.xlu0 %1213
  %1215 = vrot.lane.b32.xlu0 %v1208, 96
  %v1216 = vpop.permute.xlu0 %1215
  %1217 = vrot.lane.b32.xlu0 %v1209, 96
  %v1218 = vpop.permute.xlu0 %1217
  %v1219 = vsel %vm120, %v1214, 0
  %v1221 = vsel %vm120, %v1216, 0
  %v1223 = vsel %vm120, %v1218, 0
  %1225 = vmatprep.subr.mxu0 0.0
  %1226 = vmatpush1.msra.mxu0 0.0
  %1227 = vmatprep.subr.mxu0 0.0
  %1228 = vmatpush1.msra.mxu0 0.0
  %1229 = vmatprep.subr.mxu0 0.0
  %1230 = vmatpush1.msra.mxu0 0.0
  %1231 = vmatprep.subr.mxu0 0.0
  %1232 = vmatpush1.msra.mxu0 0.0
  %1233 = vmatprep.subr.mxu0 0.0
  %1234 = vmatpush1.msra.mxu0 0.0
  %1235 = vmatprep.subr.mxu0 0.0
  %1236 = vmatpush1.msra.mxu0 0.0
  %1237 = vmatprep.subr.mxu0 0.0
  %1238 = vmatpush1.msra.mxu0 0.0
  %1239 = vmatprep.subr.mxu0 0.0
  %1240 = vmatpush1.msra.mxu0 0.0
  %1241 = vmatprep.subr.mxu0 0.0
  %1242 = vmatpush1.msra.mxu0 0.0
  %1243 = vmatprep.subr.mxu0 0.0
  %1244 = vmatpush1.msra.mxu0 0.0
  %1245 = vmatprep.subr.mxu0 0.0
  %1246 = vmatpush1.msra.mxu0 0.0
  %1247 = vmatprep.subr.mxu0 0.0
  %1248 = vmatpush1.msra.mxu0 0.0
  %1249 = vmatprep.subr.mxu0 0.0
  %1250 = vmatpush1.msra.mxu0 %v1179
  %1251 = vmatprep.subr.mxu0 0.0
  %1252 = vmatpush1.msra.mxu0 %v1178
  %1253 = vmatprep.subr.mxu0 0.0
  %1254 = vmatpush1.msra.mxu0 %v1177
  %1255 = vmatprep.subr.mxu0 0.0
  %1256 = vmatpush1.msra.mxu0 %v1176
  %1257 = vmatprep.subr.mxu0 0.0
  %1258 = vmatpush2.msra.mxu0 0.0
  %1259 = vmatprep.subr.mxu0 0.0
  %1260 = vmatpush2.msra.mxu0 0.0
  %1261 = vmatprep.subr.mxu0 0.0
  %1262 = vmatpush2.msra.mxu0 0.0
  %1263 = vmatprep.subr.mxu0 0.0
  %1264 = vmatpush2.msra.mxu0 0.0
  %1265 = vmatprep.subr.mxu0 0.0
  %1266 = vmatpush2.msra.mxu0 0.0
  %1267 = vmatprep.subr.mxu0 0.0
  %1268 = vmatpush2.msra.mxu0 0.0
  %1269 = vmatprep.subr.mxu0 0.0
  %1270 = vmatpush2.msra.mxu0 0.0
  %1271 = vmatprep.subr.mxu0 0.0
  %1272 = vmatpush2.msra.mxu0 0.0
  %1273 = vmatprep.subr.mxu0 0.0
  %1274 = vmatpush2.msra.mxu0 0.0
  %1275 = vmatprep.subr.mxu0 0.0
  %1276 = vmatpush2.msra.mxu0 0.0
  %1277 = vmatprep.subr.mxu0 0.0
  %1278 = vmatpush2.msra.mxu0 0.0
  %1279 = vmatprep.subr.mxu0 0.0
  %1280 = vmatpush2.msra.mxu0 0.0
  %1281 = vmatprep.subr.mxu0 0.0
  %1282 = vmatpush2.msra.mxu0 0.0
  %1283 = vmatprep.subr.mxu0 0.0
  %1284 = vmatpush2.msra.mxu0 0.0
  %1285 = vmatprep.subr.mxu0 0.0
  %1286 = vmatpush2.msra.mxu0 0.0
  %1287 = vmatprep.subr.mxu0 0.0
  %1288 = vmatpush2.msra.mxu0 0.0
  %1289 = vmatprep.mubr.f32.mxu0 0.0
  %1290 = vmatmul.mubr.f32.gmra.mxu0 %v1219
  %v1291 = vpop.f32.mrf.mxu0
  %v1292 = vadd.f32 0.0, %v1291
  %v1293 = vpop.f32.mrf.mxu0
  %1294 = vmatprep.mubr.f32.mxu0 0.0
  %1295 = vmatmul.mubr.f32.gmra.mxu0 %v1221
  %v1296 = vpop.f32.mrf.mxu0
  %v1297 = vadd.f32 0.0, %v1296
  %v1298 = vpop.f32.mrf.mxu0
  %1299 = vmatprep.mubr.f32.mxu0 0.0
  %1300 = vmatmul.mubr.f32.gmra.mxu0 %v1223
  %v1301 = vpop.f32.mrf.mxu0
  %v1302 = vadd.f32 0.0, %v1301
  %v1303 = vpop.f32.mrf.mxu0
  %1304 = vdwg.mxu0
  %vm1305 = vcmask 64512
  %v1306 = vsel %vm1305, %v1292, -inf
  %v1307 = vsel %vm1305, %v1297, -inf
  %vm1308 = vcmask 58368
  %v1309 = vsel %vm1308, %v1302, -inf
  %v1310 = vmax.f32 %v1306, %v1307
  %v1311 = vmax.f32 %v1310, %v1309
  %v1312 = vrot.slane %v1311, 4
  %v1313 = vmax.f32 %v1311, %v1312
  %v1314 = vrot.slane %v1313, 2
  %v1315 = vmax.f32 %v1313, %v1314
  %v1316 = vrot.slane %v1315, 1
  %v1317 = vmax.f32 %v1315, %v1316
  %v1318 = vsub.f32 %v1292, %v1317
  %v1319 = vsub.f32 %v1297, %v1317
  %v1320 = vsub.f32 %v1302, %v1317
  %v1321 = vmul.f32 %v1318, 1.442695
  %v1322 = vpow.pop %v1321
  %v1323 = vmul.f32 %v1319, 1.442695
  %v1324 = vpow.pop %v1323
  %v1325 = vmul.f32 %v1320, 1.442695
  %v1326 = vpow.pop %v1325
  %v1328 = vsel %vm1305, %v1322, 0
  %v1331 = vsel %vm1305, %v1324, 0
  %v1334 = vsel %vm1305, %v1326, 0
  %1336 = vmatprep.subr.mxu0 0.0
  %1337 = vmatpush1.msra.mxu0 0.0
  %1338 = vmatprep.subr.mxu0 0.0
  %1339 = vmatpush1.msra.mxu0 0.0
  %1340 = vmatprep.subr.mxu0 0.0
  %1341 = vmatpush1.msra.mxu0 0.0
  %1342 = vmatprep.subr.mxu0 0.0
  %1343 = vmatpush1.msra.mxu0 0.0
  %1344 = vmatprep.subr.mxu0 0.0
  %1345 = vmatpush1.msra.mxu0 0.0
  %1346 = vmatprep.subr.mxu0 0.0
  %1347 = vmatpush1.msra.mxu0 0.0
  %1348 = vmatprep.subr.mxu0 0.0
  %1349 = vmatpush1.msra.mxu0 0.0
  %1350 = vmatprep.subr.mxu0 0.0
  %1351 = vmatpush1.msra.mxu0 0.0
  %1352 = vmatprep.subr.mxu0 0.0
  %1353 = vmatpush1.msra.mxu0 0.0
  %1354 = vmatprep.subr.mxu0 0.0
  %1355 = vmatpush1.msra.mxu0 0.0
  %1356 = vmatprep.subr.mxu0 0.0
  %1357 = vmatpush1.msra.mxu0 0.0
  %1358 = vmatprep.subr.mxu0 0.0
  %1359 = vmatpush1.msra.mxu0 0.0
  %1360 = vmatprep.subr.mxu0 0.0
  %1361 = vmatpush1.msra.mxu0 0.0
  %1362 = vmatprep.subr.mxu0 0.0
  %1363 = vmatpush1.msra.mxu0 0.0
  %1364 = vmatprep.subr.mxu0 0.0
  %1365 = vmatpush1.msra.mxu0 0.0
  %1366 = vmatprep.subr.mxu0 0.0
  %1367 = vmatpush1.msra.mxu0 %v1186
  %1368 = vmatprep.subr.mxu0 0.0
  %1369 = vmatpush2.msra.mxu0 0.0
  %1370 = vmatprep.subr.mxu0 0.0
  %1371 = vmatpush2.msra.mxu0 0.0
  %1372 = vmatprep.subr.mxu0 0.0
  %1373 = vmatpush2.msra.mxu0 0.0
  %1374 = vmatprep.subr.mxu0 0.0
  %1375 = vmatpush2.msra.mxu0 0.0
  %1376 = vmatprep.subr.mxu0 0.0
  %1377 = vmatpush2.msra.mxu0 0.0
  %1378 = vmatprep.subr.mxu0 0.0
  %1379 = vmatpush2.msra.mxu0 0.0
  %1380 = vmatprep.subr.mxu0 0.0
  %1381 = vmatpush2.msra.mxu0 0.0
  %1382 = vmatprep.subr.mxu0 0.0
  %1383 = vmatpush2.msra.mxu0 0.0
  %1384 = vmatprep.subr.mxu0 0.0
  %1385 = vmatpush2.msra.mxu0 0.0
  %1386 = vmatprep.subr.mxu0 0.0
  %1387 = vmatpush2.msra.mxu0 0.0
  %1388 = vmatprep.subr.mxu0 0.0
  %1389 = vmatpush2.msra.mxu0 0.0
  %1390 = vmatprep.subr.mxu0 0.0
  %1391 = vmatpush2.msra.mxu0 0.0
  %1392 = vmatprep.subr.mxu0 0.0
  %1393 = vmatpush2.msra.mxu0 0.0
  %1394 = vmatprep.subr.mxu0 0.0
  %1395 = vmatpush2.msra.mxu0 0.0
  %1396 = vmatprep.subr.mxu0 0.0
  %1397 = vmatpush2.msra.mxu0 0.0
  %1398 = vmatprep.subr.mxu0 0.0
  %1399 = vmatpush2.msra.mxu0 0.0
  %1400 = vmatprep.mubr.f32.mxu0 0.0
  %1401 = vmatmul.mubr.f32.gmra.mxu0 %v1328
  %v1402 = vpop.f32.mrf.mxu0
  %v1403 = vadd.f32 0.0, %v1402
  %v1404 = vpop.f32.mrf.mxu0
  %1405 = vmatprep.mubr.f32.mxu0 0.0
  %1406 = vmatmul.mubr.f32.gmra.mxu0 %v1331
  %v1407 = vpop.f32.mrf.mxu0
  %v1408 = vadd.f32 0.0, %v1407
  %v1409 = vpop.f32.mrf.mxu0
  %1410 = vmatprep.mubr.f32.mxu0 0.0
  %1411 = vmatmul.mubr.f32.gmra.mxu0 %v1334
  %v1412 = vpop.f32.mrf.mxu0
  %v1413 = vadd.f32 0.0, %v1412
  %v1414 = vpop.f32.mrf.mxu0
  %1415 = vdwg.mxu0
  %1418 = vrot.lane.b32.xlu0 %v1141, 64
  %v1419 = vpop.permute.xlu0 %1418
  %1420 = vrot.lane.b32.xlu0 %v1146, 64
  %v1421 = vpop.permute.xlu0 %1420
  %1422 = vrot.lane.b32.xlu0 %v1151, 64
  %v1423 = vpop.permute.xlu0 %1422
  %v1427 = vmul.f32 %v1403, %v1419
  %v1428 = vmul.f32 %v1408, %v1421
  %v1429 = vmul.f32 %v1413, %v1423
  %1433 = vrot.lane.b32.xlu0 %v1403, 32
  %v1434 = vpop.permute.xlu0 %1433
  %1435 = vrot.lane.b32.xlu0 %v1408, 32
  %v1436 = vpop.permute.xlu0 %1435
  %1437 = vrot.lane.b32.xlu0 %v1413, 32
  %v1438 = vpop.permute.xlu0 %1437
  %v1442 = vsel %vm120, %v1427, %v1434
  %v1443 = vsel %vm120, %v1428, %v1436
  %v1444 = vsel %vm120, %v1429, %v1438
  %vm1445 = vcmask 146432
  %v1447 = vsel %vm1445, %v1189, 0
  %v1450 = vsel %vm1049, %v1444, 0
  %1452 = vmatprep.subr.mxu0 0.0
  %1453 = vmatpush1.msra.mxu0 0.0
  %1454 = vmatprep.subr.mxu0 0.0
  %1455 = vmatpush1.msra.mxu0 0.0
  %1456 = vmatprep.subr.mxu0 0.0
  %1457 = vmatpush1.msra.mxu0 0.0
  %1458 = vmatprep.subr.mxu0 0.0
  %1459 = vmatpush1.msra.mxu0 0.0
  %1460 = vmatprep.subr.mxu0 0.0
  %1461 = vmatpush1.msra.mxu0 0.0
  %1462 = vmatprep.subr.mxu0 0.0
  %1463 = vmatpush1.msra.mxu0 0.0
  %1464 = vmatprep.subr.mxu0 0.0
  %1465 = vmatpush1.msra.mxu0 0.0
  %1466 = vmatprep.subr.mxu0 0.0
  %1467 = vmatpush1.msra.mxu0 0.0
  %1468 = vmatprep.subr.mxu0 0.0
  %1469 = vmatpush1.msra.mxu0 0.0
  %1470 = vmatprep.subr.mxu0 0.0
  %1471 = vmatpush1.msra.mxu0 0.0
  %1472 = vmatprep.subr.mxu0 0.0
  %1473 = vmatpush1.msra.mxu0 0.0
  %1474 = vmatprep.subr.mxu0 0.0
  %1475 = vmatpush1.msra.mxu0 0.0
  %1476 = vmatprep.subr.mxu0 0.0
  %1477 = vmatpush1.msra.mxu0 0.0
  %1478 = vmatprep.subr.mxu0 0.0
  %1479 = vmatpush1.msra.mxu0 %v1450
  %1480 = vmatprep.subr.mxu0 0.0
  %1481 = vmatpush1.msra.mxu0 %v1443
  %1482 = vmatprep.subr.mxu0 0.0
  %1483 = vmatpush1.msra.mxu0 %v1442
  %1484 = vmatprep.subr.mxu0 0.0
  %1485 = vmatpush2.msra.mxu0 0.0
  %1486 = vmatprep.subr.mxu0 0.0
  %1487 = vmatpush2.msra.mxu0 0.0
  %1488 = vmatprep.subr.mxu0 0.0
  %1489 = vmatpush2.msra.mxu0 0.0
  %1490 = vmatprep.subr.mxu0 0.0
  %1491 = vmatpush2.msra.mxu0 0.0
  %1492 = vmatprep.subr.mxu0 0.0
  %1493 = vmatpush2.msra.mxu0 0.0
  %1494 = vmatprep.subr.mxu0 0.0
  %1495 = vmatpush2.msra.mxu0 0.0
  %1496 = vmatprep.subr.mxu0 0.0
  %1497 = vmatpush2.msra.mxu0 0.0
  %1498 = vmatprep.subr.mxu0 0.0
  %1499 = vmatpush2.msra.mxu0 0.0
  %1500 = vmatprep.subr.mxu0 0.0
  %1501 = vmatpush2.msra.mxu0 0.0
  %1502 = vmatprep.subr.mxu0 0.0
  %1503 = vmatpush2.msra.mxu0 0.0
  %1504 = vmatprep.subr.mxu0 0.0
  %1505 = vmatpush2.msra.mxu0 0.0
  %1506 = vmatprep.subr.mxu0 0.0
  %1507 = vmatpush2.msra.mxu0 0.0
  %1508 = vmatprep.subr.mxu0 0.0
  %1509 = vmatpush2.msra.mxu0 0.0
  %1510 = vmatprep.subr.mxu0 0.0
  %1511 = vmatpush2.msra.mxu0 0.0
  %1512 = vmatprep.subr.mxu0 0.0
  %1513 = vmatpush2.msra.mxu0 0.0
  %1514 = vmatprep.subr.mxu0 0.0
  %1515 = vmatpush2.msra.mxu0 0.0
  %1516 = vmatprep.mubr.f32.mxu0 0.0
  %1517 = vmatmul.mubr.f32.gmra.mxu0 %v1447
  %v1518 = vpop.f32.mrf.mxu0
  %v1519 = vadd.f32 0.0, %v1518
  %v1520 = vpop.f32.mrf.mxu0
  %1521 = vdwg.mxu0
  %v1522 = vrcp.pop %v1519
  %1524 = vrot.lane.b32.xlu0 %v1522, 96
  %v1525 = vpop.permute.xlu0 %1524
  %v1527 = vmul.f32 %v1519, %v1525
  %v1528 = vlaneseq
  %v1529 = vshrl.u32 %v1528, 7
  %v1530 = vsub.s32 0, %v1529
  %v1531 = vrot.slane %v22, %v1530
  %1536 = vrot.lane.b32.xlu0 %v24, 32
  %v1537 = vpop.permute.xlu0 %1536
  %1538 = vrot.lane.b32.xlu0 %v25, 32
  %v1539 = vpop.permute.xlu0 %1538
  %1540 = vrot.lane.b32.xlu0 %v26, 32
  %v1541 = vpop.permute.xlu0 %1540
  %1542 = vrot.lane.b32.xlu0 %v27, 32
  %v1543 = vpop.permute.xlu0 %1542
  %v1549 = vsel %vm120, %v1527, 0
  %1551 = vmatprep.subr.mxu0 0.0
  %1552 = vmatpush1.msra.mxu0 0.0
  %1553 = vmatprep.subr.mxu0 0.0
  %1554 = vmatpush1.msra.mxu0 0.0
  %1555 = vmatprep.subr.mxu0 0.0
  %1556 = vmatpush1.msra.mxu0 0.0
  %1557 = vmatprep.subr.mxu0 0.0
  %1558 = vmatpush1.msra.mxu0 0.0
  %1559 = vmatprep.subr.mxu0 0.0
  %1560 = vmatpush1.msra.mxu0 0.0
  %1561 = vmatprep.subr.mxu0 0.0
  %1562 = vmatpush1.msra.mxu0 0.0
  %1563 = vmatprep.subr.mxu0 0.0
  %1564 = vmatpush1.msra.mxu0 0.0
  %1565 = vmatprep.subr.mxu0 0.0
  %1566 = vmatpush1.msra.mxu0 0.0
  %1567 = vmatprep.subr.mxu0 0.0
  %1568 = vmatpush1.msra.mxu0 0.0
  %1569 = vmatprep.subr.mxu0 0.0
  %1570 = vmatpush1.msra.mxu0 0.0
  %1571 = vmatprep.subr.mxu0 0.0
  %1572 = vmatpush1.msra.mxu0 0.0
  %1573 = vmatprep.subr.mxu0 0.0
  %1574 = vmatpush1.msra.mxu0 0.0
  %1575 = vmatprep.subr.mxu0 0.0
  %1576 = vmatpush1.msra.mxu0 %v1543
  %1577 = vmatprep.subr.mxu0 0.0
  %1578 = vmatpush1.msra.mxu0 %v1541
  %1579 = vmatprep.subr.mxu0 0.0
  %1580 = vmatpush1.msra.mxu0 %v1539
  %1581 = vmatprep.subr.mxu0 0.0
  %1582 = vmatpush1.msra.mxu0 %v1537
  %1583 = vmatprep.subr.mxu0 0.0
  %1584 = vmatpush2.msra.mxu0 0.0
  %1585 = vmatprep.subr.mxu0 0.0
  %1586 = vmatpush2.msra.mxu0 0.0
  %1587 = vmatprep.subr.mxu0 0.0
  %1588 = vmatpush2.msra.mxu0 0.0
  %1589 = vmatprep.subr.mxu0 0.0
  %1590 = vmatpush2.msra.mxu0 0.0
  %1591 = vmatprep.subr.mxu0 0.0
  %1592 = vmatpush2.msra.mxu0 0.0
  %1593 = vmatprep.subr.mxu0 0.0
  %1594 = vmatpush2.msra.mxu0 0.0
  %1595 = vmatprep.subr.mxu0 0.0
  %1596 = vmatpush2.msra.mxu0 0.0
  %1597 = vmatprep.subr.mxu0 0.0
  %1598 = vmatpush2.msra.mxu0 0.0
  %1599 = vmatprep.subr.mxu0 0.0
  %1600 = vmatpush2.msra.mxu0 0.0
  %1601 = vmatprep.subr.mxu0 0.0
  %1602 = vmatpush2.msra.mxu0 0.0
  %1603 = vmatprep.subr.mxu0 0.0
  %1604 = vmatpush2.msra.mxu0 0.0
  %1605 = vmatprep.subr.mxu0 0.0
  %1606 = vmatpush2.msra.mxu0 0.0
  %1607 = vmatprep.subr.mxu0 0.0
  %1608 = vmatpush2.msra.mxu0 0.0
  %1609 = vmatprep.subr.mxu0 0.0
  %1610 = vmatpush2.msra.mxu0 0.0
  %1611 = vmatprep.subr.mxu0 0.0
  %1612 = vmatpush2.msra.mxu0 0.0
  %1613 = vmatprep.subr.mxu0 0.0
  %1614 = vmatpush2.msra.mxu0 0.0
  %1615 = vmatprep.mubr.f32.mxu0 0.0
  %1616 = vmatmul.mubr.f32.gmra.mxu0 %v1549
  %v1617 = vpop.f32.mrf.mxu0
  %v1618 = vadd.f32 %v1531, %v1617
  %v1619 = vpop.f32.mrf.mxu0
  %1620 = vdwg.mxu0
  %v1621 = vand.u32 2147483647, %v1618
  %vm1622 = vcmask 1024
  %1623 = vst.msk [vmem:[%s3] sm:$0x3] %vm1622, %v1621
  // Predicated region
  $region14: #{t3_lstm_forward.1} parent=0 // pred_check
    _
  $region15: #{t3_lstm_forward.1} parent=0 // pred_check_branch
    %1625 = sbr.rel (0) target = $region17
  $region16: #{t3_lstm_forward.1} parent=0 // pred_region
    _
  $region17: #{t3_lstm_forward.1} parent=0 // pred_fallthru
    _
  // Predicated region
  $region18: #{t3_lstm_forward.1} parent=0 // pred_check
    _
  $region19: #{t3_lstm_forward.1} parent=0 // pred_check_branch
    %1627 = sbr.rel (0) target = $region21
  $region20: #{t3_lstm_forward.1} parent=0 // pred_region
    _
  $region21: #{t3_lstm_forward.1} parent=0 // pred_fallthru
    _

</llo_original>
